<compile_context>
chip_gen: v6e
topology: v6e:2x2x1
jax: 0.10.0
libtpu: 0.0.40
codegen_flags: <defaults>
</compile_context>

<pallas_src>
import functools

import jax
import jax.numpy as jnp
from jax.experimental import pallas as pl
from jax.experimental.pallas import tpu as pltpu

CIN = 64                 # Conv2d(64, channel, 3, padding=1)
CHANNEL = 64             # hidden channels per head
NUM_CLASSES = 80         # cls head output channels
COUT_TOTAL = NUM_CLASSES + 3 + 2   # 85 real output channels (cls | wh | reg)
CK_PAD = 256             # kx-concat contraction depth: 3*64 = 192 padded to 256
CMID_PAD = 256           # fused hidden width: 3 heads * 64 = 192 padded to 256
COUT_PAD = 128           # fused output width: 85 padded to lane-dense 128
BN_EPS = 1e-5
SUBLANE = 16             # bf16 sublane packing

HEADS = (("cls", NUM_CLASSES), ("wh", 3), ("reg", 2))


def _round_up(x, m):
    return (x + m - 1) // m * m


def _pick_row_tile(total_rows, target=512):
    """Largest multiple of 16 that divides total_rows and is <= target."""
    best, t = SUBLANE, SUBLANE
    cap = min(target, total_rows)
    while t <= cap:
        if total_rows % t == 0:
            best = t
        t += SUBLANE
    return best


# ----------------------------------------------------------------------------
# Kernel: grid = (image, row-tile).
#   src_ref : (R_SRC, 256) bf16  kx-concat, width/channel-padded rows (resident)
#   w1_ref  : (3, 256, 256) bf16 per-ky fused conv weights (BN scale folded)
#   bnb_ref : (1, 256)      f32  fused BN bias
#   w2_ref  : (256, 128)    bf16 block-diagonal fused 1x1 conv weights
#   b2_ref  : (1, 128)      f32  fused 1x1 conv bias
#   out_ref : (TILE_ROWS, 128) bf16
# Output pixel p (flattened with pitch W_PAD); tap ky reads source row
# p + ky*W_PAD, so the 3x3 conv is 3 aligned-offset slices + K=192 matmuls.
# ----------------------------------------------------------------------------
def _fused_head_kernel(src_ref, w1_ref, bnb_ref, w2_ref, b2_ref, out_ref, *,
                       tile_rows, w_pad, num_cls):
    row0 = pl.program_id(1) * tile_rows
    h = None
    for ky in range(3):
        off = pl.multiple_of(row0 + ky * w_pad, SUBLANE)
        x_tap = src_ref[pl.ds(off, tile_rows), :]          # (TR, 256) bf16
        contrib = jnp.dot(x_tap, w1_ref[ky],
                          preferred_element_type=jnp.float32)
        h = contrib if h is None else h + contrib
    # folded BatchNorm (scale already inside w1) + ReLU, in f32
    h = jnp.maximum(h + bnb_ref[...], 0.0)
    # fused 1x1 conv (block-diagonal) + bias
    y = jnp.dot(h.astype(jnp.bfloat16), w2_ref[...],
                preferred_element_type=jnp.float32)
    y = y + b2_ref[...]
    # sigmoid only on the cls lanes (first num_cls output channels)
    lane = jax.lax.broadcasted_iota(jnp.int32, (1, y.shape[-1]), 1)
    y = jnp.where(lane < num_cls, jax.nn.sigmoid(y), y)
    out_ref[...] = y.astype(out_ref.dtype)


def _run_fused(src, fused, *, H, W, w_pad):
    N, R_SRC, CK = src.shape
    assert CK == CK_PAD
    total_rows = H * w_pad
    tile_rows = _pick_row_tile(total_rows)
    r_tiles = total_rows // tile_rows

    kernel = functools.partial(_fused_head_kernel, tile_rows=tile_rows,
                               w_pad=w_pad, num_cls=NUM_CLASSES)

    # VMEM budget: 2x resident src block + 2x out tile + 2x weights + headroom
    # for the per-tile f32 temporaries h/y and compiler scratch.
    vmem_bytes = (2 * R_SRC * CK_PAD * 2
                  + 2 * tile_rows * COUT_PAD * 2
                  + 2 * (3 * CK_PAD * CMID_PAD + CMID_PAD * COUT_PAD) * 2
                  + 2 * (CMID_PAD + COUT_PAD) * 4
                  + tile_rows * (CMID_PAD + COUT_PAD) * 4
                  + (8 << 20))
    vmem_bytes = int(min(vmem_bytes, 100 * 1024 * 1024))

    return pl.pallas_call(
        kernel,
        out_shape=jax.ShapeDtypeStruct((N, total_rows, COUT_PAD),
                                       jnp.bfloat16),
        grid_spec=pltpu.PrefetchScalarGridSpec(
            num_scalar_prefetch=0,
            grid=(N, r_tiles),
            in_specs=[
                pl.BlockSpec((None, R_SRC, CK_PAD), lambda n, r: (n, 0, 0)),
                pl.BlockSpec((3, CK_PAD, CMID_PAD), lambda n, r: (0, 0, 0)),
                pl.BlockSpec((1, CMID_PAD), lambda n, r: (0, 0)),
                pl.BlockSpec((CMID_PAD, COUT_PAD), lambda n, r: (0, 0)),
                pl.BlockSpec((1, COUT_PAD), lambda n, r: (0, 0)),
            ],
            out_specs=pl.BlockSpec((None, tile_rows, COUT_PAD),
                                   lambda n, r: (n, r, 0)),
        ),
        compiler_params=pltpu.CompilerParams(
            dimension_semantics=("parallel", "parallel"),
            vmem_limit_bytes=vmem_bytes),
    )(src, fused["w1"], fused["bnb"], fused["w2"], fused["b2"])


# ----------------------------------------------------------------------------
# Wrapper-side data prep
# ----------------------------------------------------------------------------
def _prepare_source(x_nchw):
    """(N,64,H,W) f32 -> ((N, (H+2)*W_PAD, 256) bf16, W_PAD).

    Channel layout per flattened row (y*W_PAD + x): [kx*64 + cin] = padded
    input at (y, x+kx, cin); width padded to a multiple of 16 so every tap
    offset (row0 + ky*W_PAD) is sublane-aligned.
    """
    N, C, H, W = x_nchw.shape
    x = jnp.transpose(x_nchw, (0, 2, 3, 1)).astype(jnp.bfloat16)   # NHWC bf16
    xp = jnp.pad(x, ((0, 0), (1, 1), (1, 1), (0, 0)))              # (N,H+2,W+2,64)
    src3 = jnp.concatenate([xp[:, :, kx:kx + W, :] for kx in range(3)],
                           axis=-1)                                # (N,H+2,W,192)
    w_pad = _round_up(W, SUBLANE)
    src3 = jnp.pad(src3, ((0, 0), (0, 0), (0, w_pad - W),
                          (0, CK_PAD - 3 * CIN)))                  # (N,H+2,W_PAD,256)
    return src3.reshape(N, (H + 2) * w_pad, CK_PAD), w_pad


def fuse_head_params(params):
    """Fold BN + fuse the three heads into one kx-concat weight set."""
    w1s = jnp.zeros((3, CK_PAD, CMID_PAD), jnp.float32)
    bnb = jnp.zeros((1, CMID_PAD), jnp.float32)
    w2 = jnp.zeros((CMID_PAD, COUT_PAD), jnp.float32)
    b2 = jnp.zeros((1, COUT_PAD), jnp.float32)
    col = 0
    for hi, (name, cout) in enumerate(HEADS):
        p = params[name]
        scale = p["gamma"] / jnp.sqrt(p["running_var"] + BN_EPS)     # (64,)
        bias = p["beta"] - p["running_mean"] * scale
        # conv1 (Cmid, Cin, ky, kx) -> (ky, kx, Cin, Cmid) -> (ky, kx*Cin, Cmid)
        # BN scale folded into the hidden-channel columns.
        w1 = jnp.transpose(p["w1"], (2, 3, 1, 0)).reshape(3, 3 * CIN, CHANNEL)
        w1 = w1 * scale[None, None, :]
        lo = hi * CHANNEL
        w1s = w1s.at[:, :3 * CIN, lo:lo + CHANNEL].set(w1)
        bnb = bnb.at[0, lo:lo + CHANNEL].set(bias)
        # conv2 1x1 (cout, Cmid, 1, 1) -> (Cmid, cout), placed block-diagonally
        w2h = jnp.transpose(p["w2"][:, :, 0, 0], (1, 0))
        w2 = w2.at[lo:lo + CHANNEL, col:col + cout].set(w2h)
        b2 = b2.at[0, col:col + cout].set(p["b2"])
        col += cout
    return dict(w1=w1s.astype(jnp.bfloat16), bnb=bnb,
                w2=w2.astype(jnp.bfloat16), b2=b2)


def _make_head_params(key, cout):
    k1, k2, k3 = jax.random.split(key, 3)
    return dict(
        w1=jax.random.normal(k1, (CHANNEL, CIN, 3, 3), jnp.float32) * 0.05,
        gamma=jnp.ones((CHANNEL,), jnp.float32),
        beta=jnp.zeros((CHANNEL,), jnp.float32),
        running_mean=jnp.zeros((CHANNEL,), jnp.float32),
        running_var=jnp.ones((CHANNEL,), jnp.float32),
        w2=jax.random.normal(k2, (cout, CHANNEL, 1, 1), jnp.float32) * 0.05,
        b2=jax.random.normal(k3, (cout,), jnp.float32) * 0.01,
    )


def resnet50_head_forward(x_nchw, fused):
    """x_nchw: (N, 64, H, W) f32 -> (hm, wh, offset) in NCHW."""
    N, C, H, W = x_nchw.shape
    assert C == CIN
    src, w_pad = _prepare_source(x_nchw)
    out = _run_fused(src, fused, H=H, W=W, w_pad=w_pad)    # (N, H*W_PAD, 128)
    out = out.reshape(N, H, w_pad, COUT_PAD)[:, :, :W, :]
    # slice the small channel groups BEFORE transposing (cuts transpose traffic)
    hm = jnp.transpose(out[..., :NUM_CLASSES], (0, 3, 1, 2)).astype(jnp.float32)
    wh = jnp.transpose(out[..., NUM_CLASSES:NUM_CLASSES + 3],
                       (0, 3, 1, 2)).astype(jnp.float32)
    offset = jnp.transpose(out[..., NUM_CLASSES + 3:COUT_TOTAL],
                           (0, 3, 1, 2)).astype(jnp.float32)
    return hm, wh, offset


# ----------------------------------------------------------------------------
# Pure-JAX reference (f32) for a loose correctness check
# ----------------------------------------------------------------------------
def _reference_forward(x, params):
    def head(p):
        y = jax.lax.conv_general_dilated(
            x, p["w1"], (1, 1), ((1, 1), (1, 1)),
            dimension_numbers=("NCHW", "OIHW", "NCHW"))
        scale = p["gamma"] / jnp.sqrt(p["running_var"] + BN_EPS)
        bias = p["beta"] - p["running_mean"] * scale
        y = y * scale[None, :, None, None] + bias[None, :, None, None]
        y = jnp.maximum(y, 0.0)
        y = jax.lax.conv_general_dilated(
            y, p["w2"], (1, 1), ((0, 0), (0, 0)),
            dimension_numbers=("NCHW", "OIHW", "NCHW"))
        return y + p["b2"][None, :, None, None]
    return (jax.nn.sigmoid(head(params["cls"])), head(params["wh"]),
            head(params["reg"]))


if __name__ == "__main__":
    key = jax.random.PRNGKey(0)
    kx, kc, kw, kr = jax.random.split(key, 4)

    # small but module-consistent shapes: batch=2, 64 input channels, 16x16
    x = jax.random.normal(kx, (2, CIN, 16, 16), jnp.float32)

    raw_params = {
        "cls": _make_head_params(kc, NUM_CLASSES),
        "wh": _make_head_params(kw, 3),
        "reg": _make_head_params(kr, 2),
    }
    fused = fuse_head_params(raw_params)

    hm, wh, offset = jax.jit(resnet50_head_forward)(x, fused)
    jax.block_until_ready((hm, wh, offset))

    assert hm.shape == (2, NUM_CLASSES, 16, 16)
    assert wh.shape == (2, 3, 16, 16)
    assert offset.shape == (2, 2, 16, 16)

    # loose tolerances (bf16 operands, f32 accumulation)
    hm_r, wh_r, off_r = jax.jit(_reference_forward)(x, raw_params)
    assert float(jnp.max(jnp.abs(hm - hm_r))) < 0.05
    assert float(jnp.max(jnp.abs(wh - wh_r))) < 0.15
    assert float(jnp.max(jnp.abs(offset - off_r))) < 0.15

    print("KERNEL_OK")
</pallas_src>

<mosaic_0001>
module attributes {stable_mosaic.version = 11 : i64} {
  func.func @_fused_head_kernel(%arg0: i32, %arg1: i32, %arg2: memref<1x288x256xbf16, #tpu.memory_space<vmem>>, %arg3: memref<3x256x256xbf16, #tpu.memory_space<vmem>>, %arg4: memref<1x256xf32, #tpu.memory_space<vmem>>, %arg5: memref<256x128xbf16, #tpu.memory_space<vmem>>, %arg6: memref<1x128xf32, #tpu.memory_space<vmem>>, %arg7: memref<1x256x128xbf16, #tpu.memory_space<vmem>>) attributes {dimension_semantics = [#tpu.dimension_semantics<parallel>, #tpu.dimension_semantics<parallel>], iteration_bounds = array<i64: 2, 1>, scalar_prefetch = 0 : i64, scratch_operands = 0 : i64, tpu.core_type = #tpu.core_type<tc>, window_params = [{transform_indices = @transform_0, window_bounds = array<i64: 1, 288, 256>}, {pipeline_mode = #tpu.pipeline_mode<synchronous>, transform_indices = @transform_1, window_bounds = array<i64: 3, 256, 256>}, {pipeline_mode = #tpu.pipeline_mode<synchronous>, transform_indices = @transform_2, window_bounds = array<i64: 1, 256>}, {pipeline_mode = #tpu.pipeline_mode<synchronous>, transform_indices = @transform_3, window_bounds = array<i64: 256, 128>}, {pipeline_mode = #tpu.pipeline_mode<synchronous>, transform_indices = @transform_4, window_bounds = array<i64: 1, 128>}, {transform_indices = @transform_5, window_bounds = array<i64: 1, 256, 128>}]} {
    %c256_i32 = arith.constant 256 : i32
    %0 = arith.muli %arg1, %c256_i32 : i32
    %c0_i32 = arith.constant 0 : i32
    %1 = arith.addi %0, %c0_i32 : i32
    %2 = tpu.assume_multiple %1, 16 : i32
    %c0 = arith.constant 0 : index
    %3 = arith.index_cast %2 : i32 to index
    %c0_0 = arith.constant 0 : index
    %4 = vector.load %arg2[%c0, %3, %c0_0] : memref<1x288x256xbf16, #tpu.memory_space<vmem>>, vector<1x256x256xbf16>
    %5 = vector.shape_cast %4 : vector<1x256x256xbf16> to vector<256x256xbf16>
    %c0_1 = arith.constant 0 : index
    %c0_2 = arith.constant 0 : index
    %c0_3 = arith.constant 0 : index
    %6 = vector.load %arg3[%c0_1, %c0_2, %c0_3] : memref<3x256x256xbf16, #tpu.memory_space<vmem>>, vector<1x256x256xbf16>
    %7 = vector.shape_cast %6 : vector<1x256x256xbf16> to vector<256x256xbf16>
    %cst = arith.constant dense<0.000000e+00> : vector<256x256xf32>
    %8 = tpu.matmul %5, %7, %cst {dimension_numbers = #tpu.dot_dimension_numbers<[1], [0], [0], [1], [0, 0, 1, 1], [], []>} : vector<256x256xbf16>, vector<256x256xbf16>, vector<256x256xf32> -> vector<256x256xf32>
    %c16_i32 = arith.constant 16 : i32
    %9 = arith.addi %0, %c16_i32 : i32
    %10 = tpu.assume_multiple %9, 16 : i32
    %c0_4 = arith.constant 0 : index
    %11 = arith.index_cast %10 : i32 to index
    %c0_5 = arith.constant 0 : index
    %12 = vector.load %arg2[%c0_4, %11, %c0_5] : memref<1x288x256xbf16, #tpu.memory_space<vmem>>, vector<1x256x256xbf16>
    %13 = vector.shape_cast %12 : vector<1x256x256xbf16> to vector<256x256xbf16>
    %c1 = arith.constant 1 : index
    %c0_6 = arith.constant 0 : index
    %c0_7 = arith.constant 0 : index
    %14 = vector.load %arg3[%c1, %c0_6, %c0_7] : memref<3x256x256xbf16, #tpu.memory_space<vmem>>, vector<1x256x256xbf16>
    %15 = vector.shape_cast %14 : vector<1x256x256xbf16> to vector<256x256xbf16>
    %cst_8 = arith.constant dense<0.000000e+00> : vector<256x256xf32>
    %16 = tpu.matmul %13, %15, %cst_8 {dimension_numbers = #tpu.dot_dimension_numbers<[1], [0], [0], [1], [0, 0, 1, 1], [], []>} : vector<256x256xbf16>, vector<256x256xbf16>, vector<256x256xf32> -> vector<256x256xf32>
    %17 = arith.addf %8, %16 : vector<256x256xf32>
    %c32_i32 = arith.constant 32 : i32
    %18 = arith.addi %0, %c32_i32 : i32
    %19 = tpu.assume_multiple %18, 16 : i32
    %c0_9 = arith.constant 0 : index
    %20 = arith.index_cast %19 : i32 to index
    %c0_10 = arith.constant 0 : index
    %21 = vector.load %arg2[%c0_9, %20, %c0_10] : memref<1x288x256xbf16, #tpu.memory_space<vmem>>, vector<1x256x256xbf16>
    %22 = vector.shape_cast %21 : vector<1x256x256xbf16> to vector<256x256xbf16>
    %c2 = arith.constant 2 : index
    %c0_11 = arith.constant 0 : index
    %c0_12 = arith.constant 0 : index
    %23 = vector.load %arg3[%c2, %c0_11, %c0_12] : memref<3x256x256xbf16, #tpu.memory_space<vmem>>, vector<1x256x256xbf16>
    %24 = vector.shape_cast %23 : vector<1x256x256xbf16> to vector<256x256xbf16>
    %cst_13 = arith.constant dense<0.000000e+00> : vector<256x256xf32>
    %25 = tpu.matmul %22, %24, %cst_13 {dimension_numbers = #tpu.dot_dimension_numbers<[1], [0], [0], [1], [0, 0, 1, 1], [], []>} : vector<256x256xbf16>, vector<256x256xbf16>, vector<256x256xf32> -> vector<256x256xf32>
    %26 = arith.addf %17, %25 : vector<256x256xf32>
    %c0_14 = arith.constant 0 : index
    %c0_15 = arith.constant 0 : index
    %27 = vector.load %arg4[%c0_14, %c0_15] : memref<1x256xf32, #tpu.memory_space<vmem>>, vector<1x256xf32>
    %28 = vector.broadcast %27 : vector<1x256xf32> to vector<256x256xf32>
    %29 = arith.addf %26, %28 : vector<256x256xf32>
    %cst_16 = arith.constant 0.000000e+00 : f32
    %30 = vector.broadcast %cst_16 : f32 to vector<256x256xf32>
    %31 = arith.maximumf %29, %30 : vector<256x256xf32>
    %32 = arith.truncf %31 : vector<256x256xf32> to vector<256x256xbf16>
    %c0_17 = arith.constant 0 : index
    %c0_18 = arith.constant 0 : index
    %33 = vector.load %arg5[%c0_17, %c0_18] : memref<256x128xbf16, #tpu.memory_space<vmem>>, vector<256x128xbf16>
    %cst_19 = arith.constant dense<0.000000e+00> : vector<256x128xf32>
    %34 = tpu.matmul %32, %33, %cst_19 {dimension_numbers = #tpu.dot_dimension_numbers<[1], [0], [0], [1], [0, 0, 1, 1], [], []>} : vector<256x256xbf16>, vector<256x128xbf16>, vector<256x128xf32> -> vector<256x128xf32>
    %c0_20 = arith.constant 0 : index
    %c0_21 = arith.constant 0 : index
    %35 = vector.load %arg6[%c0_20, %c0_21] : memref<1x128xf32, #tpu.memory_space<vmem>>, vector<1x128xf32>
    %36 = vector.broadcast %35 : vector<1x128xf32> to vector<256x128xf32>
    %37 = arith.addf %34, %36 : vector<256x128xf32>
    %38 = tpu.iota {dimensions = array<i32: 1>} : vector<1x128xi32>
    %c80_i32 = arith.constant 80 : i32
    %39 = vector.broadcast %c80_i32 : i32 to vector<1x128xi32>
    %40 = arith.cmpi slt, %38, %39 : vector<1x128xi32>
    %41 = arith.negf %37 : vector<256x128xf32>
    %42 = math.exp %41 : vector<256x128xf32>
    %cst_22 = arith.constant 1.000000e+00 : f32
    %43 = vector.broadcast %cst_22 : f32 to vector<256x128xf32>
    %44 = arith.addf %43, %42 : vector<256x128xf32>
    %45 = arith.divf %43, %44 : vector<256x128xf32>
    %46 = vector.shape_cast %40 : vector<1x128xi1> to vector<1x128xi1>
    %47 = vector.broadcast %46 : vector<1x128xi1> to vector<256x128xi1>
    %48 = arith.select %47, %45, %37 : vector<256x128xi1>, vector<256x128xf32>
    %49 = arith.truncf %48 : vector<256x128xf32> to vector<256x128xbf16>
    %c0_23 = arith.constant 0 : index
    %c0_24 = arith.constant 0 : index
    %c0_25 = arith.constant 0 : index
    %50 = vector.load %arg7[%c0_23, %c0_24, %c0_25] : memref<1x256x128xbf16, #tpu.memory_space<vmem>>, vector<1x256x128xbf16>
    %51 = vector.shape_cast %50 : vector<1x256x128xbf16> to vector<256x128xbf16>
    %52 = vector.shape_cast %49 : vector<256x128xbf16> to vector<1x256x128xbf16>
    tpu.vector_store %arg7[%c0_23, %c0_24, %c0_25], %52 {strides = array<i32>} : memref<1x256x128xbf16, #tpu.memory_space<vmem>>, vector<1x256x128xbf16>,
    return
  }
  func.func @transform_0(%arg0: i32, %arg1: i32) -> (i32, i32, i32) {
    %c0_i32 = arith.constant 0 : i32
    %c0_i32_0 = arith.constant 0 : i32
    %c0_i32_1 = arith.constant 0 : i32
    return %arg0, %c0_i32, %c0_i32_0 : i32, i32, i32
  }
  func.func @transform_1(%arg0: i32, %arg1: i32) -> (i32, i32, i32) {
    %c0_i32 = arith.constant 0 : i32
    %c0_i32_0 = arith.constant 0 : i32
    %c0_i32_1 = arith.constant 0 : i32
    %c0_i32_2 = arith.constant 0 : i32
    return %c0_i32, %c0_i32_0, %c0_i32_1 : i32, i32, i32
  }
  func.func @transform_2(%arg0: i32, %arg1: i32) -> (i32, i32) {
    %c0_i32 = arith.constant 0 : i32
    %c0_i32_0 = arith.constant 0 : i32
    %c0_i32_1 = arith.constant 0 : i32
    return %c0_i32, %c0_i32_0 : i32, i32
  }
  func.func @transform_3(%arg0: i32, %arg1: i32) -> (i32, i32) {
    %c0_i32 = arith.constant 0 : i32
    %c0_i32_0 = arith.constant 0 : i32
    %c0_i32_1 = arith.constant 0 : i32
    return %c0_i32, %c0_i32_0 : i32, i32
  }
  func.func @transform_4(%arg0: i32, %arg1: i32) -> (i32, i32) {
    %c0_i32 = arith.constant 0 : i32
    %c0_i32_0 = arith.constant 0 : i32
    %c0_i32_1 = arith.constant 0 : i32
    return %c0_i32, %c0_i32_0 : i32, i32
  }
  func.func @transform_5(%arg0: i32, %arg1: i32) -> (i32, i32, i32) {
    %c0_i32 = arith.constant 0 : i32
    %c0_i32_0 = arith.constant 0 : i32
    return %arg0, %arg1, %c0_i32 : i32, i32, i32
  }
}

</mosaic_0001>

<llo_original>
// kernel: resnet50_head_forward.1
$region0: #{resnet50_head_forward.1}
  #allocation0 [shape = 'u32[]', space=smem, size = 0x4, offset = 0x4, fixed_abs, tag = 'smem constant byte address 0x4 - core index']
  #allocation1 [shape = 'u32[144,128]{1,0:T(1,128)}', space=vmem, size = 0x12000, scoped, tag = 'internal scratch']
  %s0 = inlined_call_operand.vmem [shape: bf16[2,288,256], index: 0, kind: input, shape index: {}]
  %s1 = inlined_call_operand.vmem [shape: bf16[3,256,256], index: 1, kind: input, shape index: {}]
  %s2 = inlined_call_operand.vmem [shape: f32[1,256], index: 2, kind: input, shape index: {}]
  %s3 = inlined_call_operand.vmem [shape: bf16[256,128], index: 3, kind: input, shape index: {}]
  %s4 = inlined_call_operand.vmem [shape: f32[1,128], index: 4, kind: input, shape index: {}]
  %s5 = inlined_call_operand.vmem [shape: bf16[2,256,128], index: 5, kind: output, shape index: {}]
  %s6 = sld [smem:[#allocation0]]
  $region53: #{resnet50_head_forward.1} parent=0
    _
  %s8 = ssub.s32 1, %s6
  %s9 = scalar_select 0, %s8, %s6
  loop: start=0, step=1, limit=4
  $region2: #{resnet50_head_forward.1} parent=0 // loop_pre_header
    _
  $region3: #{resnet50_head_forward.1} parent=0 // loop_header
    %s11 = sphi 0, %s15
    %p12 = scmp.ge.s32.totalorder %s11, 4
    %s18 = sphi 0, %s30
    %s19 = sphi 0, %s26
    %s20 = sphi 0, %s18
    %s21 = sphi 0, %s19
    %s22 = sphi 0, %s20
    %s23 = sphi 0, %s21
    %s33 = sphi 0, %s35
    %s36 = sphi 0, %s33
    %s37 = sphi 0, %s36
    %s53 = sphi 0, %s37
    %s57 = sphi 0, %s57
    %s59 = sphi 0, %s57
    %s60 = sphi 0, %s59
    %s74 = sphi 0, %s60
    %s78 = sphi 0, %s78
    %s80 = sphi 0, %s78
    %s81 = sphi 0, %s80
    %s95 = sphi 0, %s81
    %s99 = sphi 0, %s99
    %s101 = sphi 0, %s99
    %s102 = sphi 0, %s101
    %s116 = sphi 0, %s102
    %s120 = sphi 0, %s120
    %s122 = sphi 0, %s120
    %s123 = sphi 0, %s122
    %s137 = sphi 0, %s123
    %s145 = sphi 0, %s147
    %s148 = sphi 0, %s145
    %s149 = sphi 0, %s148
    %s165 = sphi 0, %s149
  $region4: #{resnet50_head_forward.1} parent=0 // loop_header_branch
    %14 = sbr.rel (%p12) target = $region8
  $region5: #{resnet50_head_forward.1} parent=0 // loop_body
    %s16 = ssub.s32 %s11, 1
    %s17 = ssub.s32 %s11, 2
    %s24 = sadd.s32 1, %s19
    %p25 = scmp.ge.s32.totalorder %s24, 1
    %s26 = scalar_select %p25, 0, %s24
    %s27 = sadd.s32 1, %s18
    %s28 = scalar_select %p25, %s27, %s18
    %p29 = scmp.ge.s32.totalorder %s28, 2
    %s30 = scalar_select %p29, 0, %s28
    %s31 = ssub.s32 %s18, %s30
    %p32 = scmp.eq.s32.totalorder %s31, 0
    %s34 = sadd.s32 %s33, 1
    %s35 = scalar_select %p32, %s33, %s34
    %p38 = pneg %p32
    %p39 = scmp.eq.s32.totalorder %s11, 1
    %p40 = por %p38, %p39
    %p41 = scmp.ne.s32.totalorder %s33, %s36
    %p42 = scmp.eq.s32.totalorder %s11, 0
    %p43 = por %p41, %p42
    %p44 = scmp.ne.s32.totalorder %s33, %s36
    %p45 = scmp.eq.s32.totalorder %s16, 1
    %p46 = por %p44, %p45
    %p47 = scmp.ne.s32.totalorder %s36, %s37
    %p48 = scmp.eq.s32.totalorder %s16, 0
    %p49 = por %p47, %p48
    %p50 = scmp.ne.s32.totalorder %s36, %s37
    %p51 = scmp.eq.s32.totalorder %s17, 1
    %p52 = por %p50, %p51
    %p54 = scmp.ne.s32.totalorder %s37, %s53
    %p55 = scmp.eq.s32.totalorder %s17, 0
    %p56 = por %p54, %p55
    %s58 = sadd.s32 %s57, 1
    %p61 = scmp.eq.s32.totalorder %s11, 1
    %p62 = scmp.ne.s32.totalorder %s57, %s59
    %p63 = scmp.eq.s32.totalorder %s11, 0
    %p64 = por %p62, %p63
    %p65 = scmp.ne.s32.totalorder %s57, %s59
    %p66 = scmp.eq.s32.totalorder %s16, 1
    %p67 = por %p65, %p66
    %p68 = scmp.ne.s32.totalorder %s59, %s60
    %p69 = scmp.eq.s32.totalorder %s16, 0
    %p70 = por %p68, %p69
    %p71 = scmp.ne.s32.totalorder %s59, %s60
    %p72 = scmp.eq.s32.totalorder %s17, 1
    %p73 = por %p71, %p72
    %p75 = scmp.ne.s32.totalorder %s60, %s74
    %p76 = scmp.eq.s32.totalorder %s17, 0
    %p77 = por %p75, %p76
    %s79 = sadd.s32 %s78, 1
    %p82 = scmp.eq.s32.totalorder %s11, 1
    %p83 = scmp.ne.s32.totalorder %s78, %s80
    %p84 = scmp.eq.s32.totalorder %s11, 0
    %p85 = por %p83, %p84
    %p86 = scmp.ne.s32.totalorder %s78, %s80
    %p87 = scmp.eq.s32.totalorder %s16, 1
    %p88 = por %p86, %p87
    %p89 = scmp.ne.s32.totalorder %s80, %s81
    %p90 = scmp.eq.s32.totalorder %s16, 0
    %p91 = por %p89, %p90
    %p92 = scmp.ne.s32.totalorder %s80, %s81
    %p93 = scmp.eq.s32.totalorder %s17, 1
    %p94 = por %p92, %p93
    %p96 = scmp.ne.s32.totalorder %s81, %s95
    %p97 = scmp.eq.s32.totalorder %s17, 0
    %p98 = por %p96, %p97
    %s100 = sadd.s32 %s99, 1
    %p103 = scmp.eq.s32.totalorder %s11, 1
    %p104 = scmp.ne.s32.totalorder %s99, %s101
    %p105 = scmp.eq.s32.totalorder %s11, 0
    %p106 = por %p104, %p105
    %p107 = scmp.ne.s32.totalorder %s99, %s101
    %p108 = scmp.eq.s32.totalorder %s16, 1
    %p109 = por %p107, %p108
    %p110 = scmp.ne.s32.totalorder %s101, %s102
    %p111 = scmp.eq.s32.totalorder %s16, 0
    %p112 = por %p110, %p111
    %p113 = scmp.ne.s32.totalorder %s101, %s102
    %p114 = scmp.eq.s32.totalorder %s17, 1
    %p115 = por %p113, %p114
    %p117 = scmp.ne.s32.totalorder %s102, %s116
    %p118 = scmp.eq.s32.totalorder %s17, 0
    %p119 = por %p117, %p118
    %s121 = sadd.s32 %s120, 1
    %p124 = scmp.eq.s32.totalorder %s11, 1
    %p125 = scmp.ne.s32.totalorder %s120, %s122
    %p126 = scmp.eq.s32.totalorder %s11, 0
    %p127 = por %p125, %p126
    %p128 = scmp.ne.s32.totalorder %s120, %s122
    %p129 = scmp.eq.s32.totalorder %s16, 1
    %p130 = por %p128, %p129
    %p131 = scmp.ne.s32.totalorder %s122, %s123
    %p132 = scmp.eq.s32.totalorder %s16, 0
    %p133 = por %p131, %p132
    %p134 = scmp.ne.s32.totalorder %s122, %s123
    %p135 = scmp.eq.s32.totalorder %s17, 1
    %p136 = por %p134, %p135
    %p138 = scmp.ne.s32.totalorder %s123, %s137
    %p139 = scmp.eq.s32.totalorder %s17, 0
    %p140 = por %p138, %p139
    %s141 = ssub.s32 %s18, %s30
    %s142 = ssub.s32 %s19, %s26
    %s143 = sor.u32 %s141, %s142
    %p144 = scmp.eq.s32.totalorder %s143, 0
    %s146 = sadd.s32 %s145, 1
    %s147 = scalar_select %p144, %s145, %s146
    %p150 = pneg %p144
    %p151 = scmp.eq.s32.totalorder %s11, 1
    %p152 = por %p150, %p151
    %p153 = scmp.ne.s32.totalorder %s145, %s148
    %p154 = scmp.eq.s32.totalorder %s11, 0
    %p155 = por %p153, %p154
    %p156 = scmp.ne.s32.totalorder %s145, %s148
    %p157 = scmp.eq.s32.totalorder %s16, 1
    %p158 = por %p156, %p157
    %p159 = scmp.ne.s32.totalorder %s148, %s149
    %p160 = scmp.eq.s32.totalorder %s16, 0
    %p161 = por %p159, %p160
    %p162 = scmp.ne.s32.totalorder %s148, %s149
    %p163 = scmp.eq.s32.totalorder %s17, 1
    %p164 = por %p162, %p163
    %p166 = scmp.ne.s32.totalorder %s149, %s165
    %p167 = scmp.eq.s32.totalorder %s17, 0
    %p168 = por %p166, %p167
    %p169 = scmp.le.s32.totalorder 1, %s11
    %p170 = scmp.lt.s32.totalorder %s11, 3
    %p171 = pnand %p169, %p170
    %p172 = pneg %p171
    // Predicated region
    $region9: #{resnet50_head_forward.1} parent=5 // pred_check
      _
    $region10: #{resnet50_head_forward.1} parent=5 // pred_check_branch
      %174 = sbr.rel (%p171) target = $region12
    $region11: #{resnet50_head_forward.1} parent=5 // pred_region
      %s175 = ssub.s32 %s11, 1
      // Predicated region
      $region13: #{resnet50_head_forward.1} parent=11 // pred_check
        %p176 = pneg %p70
      $region14: #{resnet50_head_forward.1} parent=11 // pred_check_branch
        %178 = sbr.rel (%p176) target = $region16
      $region15: #{resnet50_head_forward.1} parent=11 // pred_region
        _
      $region16: #{resnet50_head_forward.1} parent=11 // pred_fallthru
        _
      // Predicated region
      $region17: #{resnet50_head_forward.1} parent=11 // pred_check
        %p179 = pneg %p91
      $region18: #{resnet50_head_forward.1} parent=11 // pred_check_branch
        %181 = sbr.rel (%p179) target = $region20
      $region19: #{resnet50_head_forward.1} parent=11 // pred_region
        _
      $region20: #{resnet50_head_forward.1} parent=11 // pred_fallthru
        _
      // Predicated region
      $region21: #{resnet50_head_forward.1} parent=11 // pred_check
        %p182 = pneg %p112
      $region22: #{resnet50_head_forward.1} parent=11 // pred_check_branch
        %184 = sbr.rel (%p182) target = $region24
      $region23: #{resnet50_head_forward.1} parent=11 // pred_region
        _
      $region24: #{resnet50_head_forward.1} parent=11 // pred_fallthru
        _
      // Predicated region
      $region25: #{resnet50_head_forward.1} parent=11 // pred_check
        %p185 = pneg %p133
      $region26: #{resnet50_head_forward.1} parent=11 // pred_check_branch
        %187 = sbr.rel (%p185) target = $region28
      $region27: #{resnet50_head_forward.1} parent=11 // pred_region
        _
      $region28: #{resnet50_head_forward.1} parent=11 // pred_fallthru
        _
    $region12: #{resnet50_head_forward.1} parent=5 // pred_fallthru
      _
    %p188 = scmp.lt.s32.totalorder %s11, 2
    // Predicated region
    $region29: #{resnet50_head_forward.1} parent=5 // pred_check
      %p189 = pneg %p188
    $region30: #{resnet50_head_forward.1} parent=5 // pred_check_branch
      %191 = sbr.rel (%p189) target = $region32
    $region31: #{resnet50_head_forward.1} parent=5 // pred_region
      // Predicated region
      $region33: #{resnet50_head_forward.1} parent=31 // pred_check
        %p192 = pneg %p43
      $region34: #{resnet50_head_forward.1} parent=31 // pred_check_branch
        %194 = sbr.rel (%p192) target = $region36
      $region35: #{resnet50_head_forward.1} parent=31 // pred_region
        %p195 = scmp.lt.s32.totalorder %s18, 1
        %s196 = scalar_select %p195, %s18, 1
        %s197 = smul.addr %s196, 72
        %s198 = smul.addr %s197, 4
        %s199 = scalar_lea.vmem %s0, %s198
      $region36: #{resnet50_head_forward.1} parent=31 // pred_fallthru
        _
    $region32: #{resnet50_head_forward.1} parent=5 // pred_fallthru
      _
    %p200 = scmp.le.s32.totalorder 1, %s11
    %p201 = scmp.lt.s32.totalorder %s11, 3
    %p202 = pnand %p200, %p201
    %p203 = pneg %p202
    // Predicated region
    $region37: #{resnet50_head_forward.1} parent=5 // pred_check
      _
    $region38: #{resnet50_head_forward.1} parent=5 // pred_check_branch
      %205 = sbr.rel (%p202) target = $region40
    $region39: #{resnet50_head_forward.1} parent=5 // pred_region
      %s206 = ssub.s32 %s11, 1
      %p207 = scmp.lt.s32.totalorder %s20, 1
      %s208 = scalar_select %p207, %s20, 1
      %s209 = smul.addr %s208, 72
      %s210 = smul.addr %s209, 4
      %s211 = scalar_lea.vmem %s0, %s210
      %p212 = pneg %p49
      %p213 = pneg %p46
      %p214 = pneg %p70
      %p215 = pneg %p67
      %p216 = pneg %p91
      %p217 = pneg %p88
      %p218 = pneg %p112
      %p219 = pneg %p109
      %p220 = pneg %p133
      %p221 = pneg %p130
      %p222 = pneg %p161
      %p223 = pneg %p158
      %s224 = smul.u32 32, %s21
      %p225 = scmp.lt.s32.totalorder %s20, 1
      %s226 = scalar_select %p225, %s20, 1
      %p227 = scmp.lt.s32.totalorder %s224, 31
      %s228 = scalar_select %p227, %s224, 31
      %s229 = smul.addr %s226, 32
      %s230 = sadd.s32 %s228, %s229
      %s231 = smul.addr %s230, 4
      %s232 = scalar_lea.vmem %s5, %s231
      %p233 = scmp.lt.s32.totalorder %s20, 1
      %s234 = scalar_select %p233, %s20, 1
      %s235 = smul.addr %s234, 72
      %s236 = smul.addr %s235, 4
      %s237 = scalar_lea.vmem %s0, %s236
      %s238 = smul.u32 32, %s21
      %p239 = scmp.lt.s32.totalorder %s20, 1
      %s240 = scalar_select %p239, %s20, 1
      %p241 = scmp.lt.s32.totalorder %s238, 31
      %s242 = scalar_select %p241, %s238, 31
      %s243 = smul.addr %s240, 32
      %s244 = sadd.s32 %s242, %s243
      %s245 = smul.addr %s244, 4
      %s246 = scalar_lea.vmem %s5, %s245
      %s247 = smul.u32 32, %s21
      %s249 = smul.u32 %s21, 256
      %s250 = sshra.s32 %s249, 3
      %s251 = sand.u32 %s249, 7
      %s252 = smul.u32 %s250, 2
      %s253 = smul.addr %s252, 4
      %s254 = scalar_lea.vmem %s237, %s253
      %v255 = vld [vmem:[%s254] sm:$0xff]
      %v256 = vld [vmem:[%s254 + $0x8] sm:$0xff]
      %v257 = vld [vmem:[%s254 + $0x10] sm:$0xff]
      %v258 = vld [vmem:[%s254 + $0x18] sm:$0xff]
      %v259 = vld [vmem:[%s254 + $0x20] sm:$0xff]
      %v260 = vld [vmem:[%s254 + $0x28] sm:$0xff]
      %v261 = vld [vmem:[%s254 + $0x30] sm:$0xff]
      %v262 = vld [vmem:[%s254 + $0x38] sm:$0xff]
      %v263 = vld [vmem:[%s254 + $0x40] sm:$0xff]
      %v264 = vld [vmem:[%s254 + $0x48] sm:$0xff]
      %v265 = vld [vmem:[%s254 + $0x50] sm:$0xff]
      %v266 = vld [vmem:[%s254 + $0x58] sm:$0xff]
      %v267 = vld [vmem:[%s254 + $0x60] sm:$0xff]
      %v268 = vld [vmem:[%s254 + $0x68] sm:$0xff]
      %v269 = vld [vmem:[%s254 + $0x70] sm:$0xff]
      %v270 = vld [vmem:[%s254 + $0x78] sm:$0xff]
      %v271 = vld [vmem:[%s254 + $0x80] sm:$0xff]
      %v272 = vld [vmem:[%s254 + $0x88] sm:$0xff]
      %v273 = vld [vmem:[%s254 + $0x90] sm:$0xff]
      %v274 = vld [vmem:[%s254 + $0x98] sm:$0xff]
      %v275 = vld [vmem:[%s254 + $0xa0] sm:$0xff]
      %v276 = vld [vmem:[%s254 + $0xa8] sm:$0xff]
      %v277 = vld [vmem:[%s254 + $0xb0] sm:$0xff]
      %v278 = vld [vmem:[%s254 + $0xb8] sm:$0xff]
      %v279 = vld [vmem:[%s254 + $0xc0] sm:$0xff]
      %v280 = vld [vmem:[%s254 + $0xc8] sm:$0xff]
      %v281 = vld [vmem:[%s254 + $0xd0] sm:$0xff]
      %v282 = vld [vmem:[%s254 + $0xd8] sm:$0xff]
      %v283 = vld [vmem:[%s254 + $0xe0] sm:$0xff]
      %v284 = vld [vmem:[%s254 + $0xe8] sm:$0xff]
      %v285 = vld [vmem:[%s254 + $0xf0] sm:$0xff]
      %v286 = vld [vmem:[%s254 + $0xf8] sm:$0xff]
      %v287 = vld [vmem:[%s1] sm:$0xff]
      %v288 = vld [vmem:[%s1 + $0x8] sm:$0xff]
      %v289 = vld [vmem:[%s1 + $0x10] sm:$0xff]
      %v290 = vld [vmem:[%s1 + $0x18] sm:$0xff]
      %v291 = vld [vmem:[%s1 + $0x20] sm:$0xff]
      %v292 = vld [vmem:[%s1 + $0x28] sm:$0xff]
      %v293 = vld [vmem:[%s1 + $0x30] sm:$0xff]
      %v294 = vld [vmem:[%s1 + $0x38] sm:$0xff]
      %v295 = vld [vmem:[%s1 + $0x40] sm:$0xff]
      %v296 = vld [vmem:[%s1 + $0x48] sm:$0xff]
      %v297 = vld [vmem:[%s1 + $0x50] sm:$0xff]
      %v298 = vld [vmem:[%s1 + $0x58] sm:$0xff]
      %v299 = vld [vmem:[%s1 + $0x60] sm:$0xff]
      %v300 = vld [vmem:[%s1 + $0x68] sm:$0xff]
      %v301 = vld [vmem:[%s1 + $0x70] sm:$0xff]
      %v302 = vld [vmem:[%s1 + $0x78] sm:$0xff]
      %v303 = vld [vmem:[%s1 + $0x80] sm:$0xff]
      %v304 = vld [vmem:[%s1 + $0x88] sm:$0xff]
      %v305 = vld [vmem:[%s1 + $0x90] sm:$0xff]
      %v306 = vld [vmem:[%s1 + $0x98] sm:$0xff]
      %v307 = vld [vmem:[%s1 + $0xa0] sm:$0xff]
      %v308 = vld [vmem:[%s1 + $0xa8] sm:$0xff]
      %v309 = vld [vmem:[%s1 + $0xb0] sm:$0xff]
      %v310 = vld [vmem:[%s1 + $0xb8] sm:$0xff]
      %v311 = vld [vmem:[%s1 + $0xc0] sm:$0xff]
      %v312 = vld [vmem:[%s1 + $0xc8] sm:$0xff]
      %v313 = vld [vmem:[%s1 + $0xd0] sm:$0xff]
      %v314 = vld [vmem:[%s1 + $0xd8] sm:$0xff]
      %v315 = vld [vmem:[%s1 + $0xe0] sm:$0xff]
      %v316 = vld [vmem:[%s1 + $0xe8] sm:$0xff]
      %v317 = vld [vmem:[%s1 + $0xf0] sm:$0xff]
      %v318 = vld [vmem:[%s1 + $0xf8] sm:$0xff]
      %s319 = sadd.s32 %s249, 16
      %s320 = sshra.s32 %s319, 3
      %s321 = sand.u32 %s319, 7
      %s322 = smul.u32 %s320, 2
      %s323 = smul.addr %s322, 4
      %s324 = scalar_lea.vmem %s237, %s323
      %v325 = vld [vmem:[%s324] sm:$0xff]
      %v326 = vld [vmem:[%s324 + $0x8] sm:$0xff]
      %v327 = vld [vmem:[%s324 + $0x10] sm:$0xff]
      %v328 = vld [vmem:[%s324 + $0x18] sm:$0xff]
      %v329 = vld [vmem:[%s324 + $0x20] sm:$0xff]
      %v330 = vld [vmem:[%s324 + $0x28] sm:$0xff]
      %v331 = vld [vmem:[%s324 + $0x30] sm:$0xff]
      %v332 = vld [vmem:[%s324 + $0x38] sm:$0xff]
      %v333 = vld [vmem:[%s324 + $0x40] sm:$0xff]
      %v334 = vld [vmem:[%s324 + $0x48] sm:$0xff]
      %v335 = vld [vmem:[%s324 + $0x50] sm:$0xff]
      %v336 = vld [vmem:[%s324 + $0x58] sm:$0xff]
      %v337 = vld [vmem:[%s324 + $0x60] sm:$0xff]
      %v338 = vld [vmem:[%s324 + $0x68] sm:$0xff]
      %v339 = vld [vmem:[%s324 + $0x70] sm:$0xff]
      %v340 = vld [vmem:[%s324 + $0x78] sm:$0xff]
      %v341 = vld [vmem:[%s324 + $0x80] sm:$0xff]
      %v342 = vld [vmem:[%s324 + $0x88] sm:$0xff]
      %v343 = vld [vmem:[%s324 + $0x90] sm:$0xff]
      %v344 = vld [vmem:[%s324 + $0x98] sm:$0xff]
      %v345 = vld [vmem:[%s324 + $0xa0] sm:$0xff]
      %v346 = vld [vmem:[%s324 + $0xa8] sm:$0xff]
      %v347 = vld [vmem:[%s324 + $0xb0] sm:$0xff]
      %v348 = vld [vmem:[%s324 + $0xb8] sm:$0xff]
      %v349 = vld [vmem:[%s324 + $0xc0] sm:$0xff]
      %v350 = vld [vmem:[%s324 + $0xc8] sm:$0xff]
      %v351 = vld [vmem:[%s324 + $0xd0] sm:$0xff]
      %v352 = vld [vmem:[%s324 + $0xd8] sm:$0xff]
      %v353 = vld [vmem:[%s324 + $0xe0] sm:$0xff]
      %v354 = vld [vmem:[%s324 + $0xe8] sm:$0xff]
      %v355 = vld [vmem:[%s324 + $0xf0] sm:$0xff]
      %v356 = vld [vmem:[%s324 + $0xf8] sm:$0xff]
      %s357 = scalar_lea.vmem %s1, 256
      %v358 = vld [vmem:[%s357] sm:$0xff]
      %v359 = vld [vmem:[%s357 + $0x8] sm:$0xff]
      %v360 = vld [vmem:[%s357 + $0x10] sm:$0xff]
      %v361 = vld [vmem:[%s357 + $0x18] sm:$0xff]
      %v362 = vld [vmem:[%s357 + $0x20] sm:$0xff]
      %v363 = vld [vmem:[%s357 + $0x28] sm:$0xff]
      %v364 = vld [vmem:[%s357 + $0x30] sm:$0xff]
      %v365 = vld [vmem:[%s357 + $0x38] sm:$0xff]
      %v366 = vld [vmem:[%s357 + $0x40] sm:$0xff]
      %v367 = vld [vmem:[%s357 + $0x48] sm:$0xff]
      %v368 = vld [vmem:[%s357 + $0x50] sm:$0xff]
      %v369 = vld [vmem:[%s357 + $0x58] sm:$0xff]
      %v370 = vld [vmem:[%s357 + $0x60] sm:$0xff]
      %v371 = vld [vmem:[%s357 + $0x68] sm:$0xff]
      %v372 = vld [vmem:[%s357 + $0x70] sm:$0xff]
      %v373 = vld [vmem:[%s357 + $0x78] sm:$0xff]
      %v374 = vld [vmem:[%s357 + $0x80] sm:$0xff]
      %v375 = vld [vmem:[%s357 + $0x88] sm:$0xff]
      %v376 = vld [vmem:[%s357 + $0x90] sm:$0xff]
      %v377 = vld [vmem:[%s357 + $0x98] sm:$0xff]
      %v378 = vld [vmem:[%s357 + $0xa0] sm:$0xff]
      %v379 = vld [vmem:[%s357 + $0xa8] sm:$0xff]
      %v380 = vld [vmem:[%s357 + $0xb0] sm:$0xff]
      %v381 = vld [vmem:[%s357 + $0xb8] sm:$0xff]
      %v382 = vld [vmem:[%s357 + $0xc0] sm:$0xff]
      %v383 = vld [vmem:[%s357 + $0xc8] sm:$0xff]
      %v384 = vld [vmem:[%s357 + $0xd0] sm:$0xff]
      %v385 = vld [vmem:[%s357 + $0xd8] sm:$0xff]
      %v386 = vld [vmem:[%s357 + $0xe0] sm:$0xff]
      %v387 = vld [vmem:[%s357 + $0xe8] sm:$0xff]
      %v388 = vld [vmem:[%s357 + $0xf0] sm:$0xff]
      %v389 = vld [vmem:[%s357 + $0xf8] sm:$0xff]
      %v422 = vunpack.c.l.b16 %v325
      %v423 = vunpack.c.h.b16 %v325
      %v424 = vunpack.c.l.b16 %v326
      %v425 = vunpack.c.h.b16 %v326
      %v426 = vunpack.c.l.b16 %v327
      %v427 = vunpack.c.h.b16 %v327
      %v428 = vunpack.c.l.b16 %v328
      %v429 = vunpack.c.h.b16 %v328
      %v430 = vunpack.c.l.b16 %v329
      %v431 = vunpack.c.h.b16 %v329
      %v432 = vunpack.c.l.b16 %v330
      %v433 = vunpack.c.h.b16 %v330
      %v434 = vunpack.c.l.b16 %v331
      %v435 = vunpack.c.h.b16 %v331
      %v436 = vunpack.c.l.b16 %v332
      %v437 = vunpack.c.h.b16 %v332
      %v438 = vunpack.c.l.b16 %v333
      %v439 = vunpack.c.h.b16 %v333
      %v440 = vunpack.c.l.b16 %v334
      %v441 = vunpack.c.h.b16 %v334
      %v442 = vunpack.c.l.b16 %v335
      %v443 = vunpack.c.h.b16 %v335
      %v444 = vunpack.c.l.b16 %v336
      %v445 = vunpack.c.h.b16 %v336
      %v446 = vunpack.c.l.b16 %v337
      %v447 = vunpack.c.h.b16 %v337
      %v448 = vunpack.c.l.b16 %v338
      %v449 = vunpack.c.h.b16 %v338
      %v450 = vunpack.c.l.b16 %v339
      %v451 = vunpack.c.h.b16 %v339
      %v452 = vunpack.c.l.b16 %v340
      %v453 = vunpack.c.h.b16 %v340
      %v454 = vunpack.c.l.b16 %v341
      %v455 = vunpack.c.h.b16 %v341
      %v456 = vunpack.c.l.b16 %v342
      %v457 = vunpack.c.h.b16 %v342
      %v458 = vunpack.c.l.b16 %v343
      %v459 = vunpack.c.h.b16 %v343
      %v460 = vunpack.c.l.b16 %v344
      %v461 = vunpack.c.h.b16 %v344
      %v462 = vunpack.c.l.b16 %v345
      %v463 = vunpack.c.h.b16 %v345
      %v464 = vunpack.c.l.b16 %v346
      %v465 = vunpack.c.h.b16 %v346
      %v466 = vunpack.c.l.b16 %v347
      %v467 = vunpack.c.h.b16 %v347
      %v468 = vunpack.c.l.b16 %v348
      %v469 = vunpack.c.h.b16 %v348
      %v470 = vunpack.c.l.b16 %v349
      %v471 = vunpack.c.h.b16 %v349
      %v472 = vunpack.c.l.b16 %v350
      %v473 = vunpack.c.h.b16 %v350
      %v474 = vunpack.c.l.b16 %v351
      %v475 = vunpack.c.h.b16 %v351
      %v476 = vunpack.c.l.b16 %v352
      %v477 = vunpack.c.h.b16 %v352
      %v478 = vunpack.c.l.b16 %v353
      %v479 = vunpack.c.h.b16 %v353
      %v480 = vunpack.c.l.b16 %v354
      %v481 = vunpack.c.h.b16 %v354
      %v482 = vunpack.c.l.b16 %v355
      %v483 = vunpack.c.h.b16 %v355
      %v484 = vunpack.c.l.b16 %v356
      %v485 = vunpack.c.h.b16 %v356
      %v486 = vpack.c.b16 %v424, %v422
      %v487 = vpack.c.b16 %v425, %v423
      %v488 = vpack.c.b16 %v428, %v426
      %v489 = vpack.c.b16 %v429, %v427
      %v490 = vpack.c.b16 %v432, %v430
      %v491 = vpack.c.b16 %v433, %v431
      %v492 = vpack.c.b16 %v436, %v434
      %v493 = vpack.c.b16 %v437, %v435
      %v494 = vpack.c.b16 %v440, %v438
      %v495 = vpack.c.b16 %v441, %v439
      %v496 = vpack.c.b16 %v444, %v442
      %v497 = vpack.c.b16 %v445, %v443
      %v498 = vpack.c.b16 %v448, %v446
      %v499 = vpack.c.b16 %v449, %v447
      %v500 = vpack.c.b16 %v452, %v450
      %v501 = vpack.c.b16 %v453, %v451
      %v502 = vpack.c.b16 %v456, %v454
      %v503 = vpack.c.b16 %v457, %v455
      %v504 = vpack.c.b16 %v460, %v458
      %v505 = vpack.c.b16 %v461, %v459
      %v506 = vpack.c.b16 %v464, %v462
      %v507 = vpack.c.b16 %v465, %v463
      %v508 = vpack.c.b16 %v468, %v466
      %v509 = vpack.c.b16 %v469, %v467
      %v510 = vpack.c.b16 %v472, %v470
      %v511 = vpack.c.b16 %v473, %v471
      %v512 = vpack.c.b16 %v476, %v474
      %v513 = vpack.c.b16 %v477, %v475
      %v514 = vpack.c.b16 %v480, %v478
      %v515 = vpack.c.b16 %v481, %v479
      %v516 = vpack.c.b16 %v484, %v482
      %v517 = vpack.c.b16 %v485, %v483
      %v582 = vunpack.c.l.b16 %v358
      %v583 = vunpack.c.h.b16 %v358
      %v584 = vunpack.c.l.b16 %v359
      %v585 = vunpack.c.h.b16 %v359
      %v586 = vunpack.c.l.b16 %v360
      %v587 = vunpack.c.h.b16 %v360
      %v588 = vunpack.c.l.b16 %v361
      %v589 = vunpack.c.h.b16 %v361
      %v590 = vunpack.c.l.b16 %v362
      %v591 = vunpack.c.h.b16 %v362
      %v592 = vunpack.c.l.b16 %v363
      %v593 = vunpack.c.h.b16 %v363
      %v594 = vunpack.c.l.b16 %v364
      %v595 = vunpack.c.h.b16 %v364
      %v596 = vunpack.c.l.b16 %v365
      %v597 = vunpack.c.h.b16 %v365
      %v598 = vunpack.c.l.b16 %v366
      %v599 = vunpack.c.h.b16 %v366
      %v600 = vunpack.c.l.b16 %v367
      %v601 = vunpack.c.h.b16 %v367
      %v602 = vunpack.c.l.b16 %v368
      %v603 = vunpack.c.h.b16 %v368
      %v604 = vunpack.c.l.b16 %v369
      %v605 = vunpack.c.h.b16 %v369
      %v606 = vunpack.c.l.b16 %v370
      %v607 = vunpack.c.h.b16 %v370
      %v608 = vunpack.c.l.b16 %v371
      %v609 = vunpack.c.h.b16 %v371
      %v610 = vunpack.c.l.b16 %v372
      %v611 = vunpack.c.h.b16 %v372
      %v612 = vunpack.c.l.b16 %v373
      %v613 = vunpack.c.h.b16 %v373
      %v614 = vunpack.c.l.b16 %v374
      %v615 = vunpack.c.h.b16 %v374
      %v616 = vunpack.c.l.b16 %v375
      %v617 = vunpack.c.h.b16 %v375
      %v618 = vunpack.c.l.b16 %v376
      %v619 = vunpack.c.h.b16 %v376
      %v620 = vunpack.c.l.b16 %v377
      %v621 = vunpack.c.h.b16 %v377
      %v622 = vunpack.c.l.b16 %v378
      %v623 = vunpack.c.h.b16 %v378
      %v624 = vunpack.c.l.b16 %v379
      %v625 = vunpack.c.h.b16 %v379
      %v626 = vunpack.c.l.b16 %v380
      %v627 = vunpack.c.h.b16 %v380
      %v628 = vunpack.c.l.b16 %v381
      %v629 = vunpack.c.h.b16 %v381
      %v630 = vunpack.c.l.b16 %v382
      %v631 = vunpack.c.h.b16 %v382
      %v632 = vunpack.c.l.b16 %v383
      %v633 = vunpack.c.h.b16 %v383
      %v634 = vunpack.c.l.b16 %v384
      %v635 = vunpack.c.h.b16 %v384
      %v636 = vunpack.c.l.b16 %v385
      %v637 = vunpack.c.h.b16 %v385
      %v638 = vunpack.c.l.b16 %v386
      %v639 = vunpack.c.h.b16 %v386
      %v640 = vunpack.c.l.b16 %v387
      %v641 = vunpack.c.h.b16 %v387
      %v642 = vunpack.c.l.b16 %v388
      %v643 = vunpack.c.h.b16 %v388
      %v644 = vunpack.c.l.b16 %v389
      %v645 = vunpack.c.h.b16 %v389
      %v646 = vpack.c.b16 %v584, %v582
      %v647 = vpack.c.b16 %v585, %v583
      %v648 = vpack.c.b16 %v588, %v586
      %v649 = vpack.c.b16 %v589, %v587
      %v650 = vpack.c.b16 %v592, %v590
      %v651 = vpack.c.b16 %v593, %v591
      %v652 = vpack.c.b16 %v596, %v594
      %v653 = vpack.c.b16 %v597, %v595
      %v654 = vpack.c.b16 %v600, %v598
      %v655 = vpack.c.b16 %v601, %v599
      %v656 = vpack.c.b16 %v604, %v602
      %v657 = vpack.c.b16 %v605, %v603
      %v658 = vpack.c.b16 %v608, %v606
      %v659 = vpack.c.b16 %v609, %v607
      %v660 = vpack.c.b16 %v612, %v610
      %v661 = vpack.c.b16 %v613, %v611
      %v662 = vpack.c.b16 %v616, %v614
      %v663 = vpack.c.b16 %v617, %v615
      %v664 = vpack.c.b16 %v620, %v618
      %v665 = vpack.c.b16 %v621, %v619
      %v666 = vpack.c.b16 %v624, %v622
      %v667 = vpack.c.b16 %v625, %v623
      %v668 = vpack.c.b16 %v628, %v626
      %v669 = vpack.c.b16 %v629, %v627
      %v670 = vpack.c.b16 %v632, %v630
      %v671 = vpack.c.b16 %v633, %v631
      %v672 = vpack.c.b16 %v636, %v634
      %v673 = vpack.c.b16 %v637, %v635
      %v674 = vpack.c.b16 %v640, %v638
      %v675 = vpack.c.b16 %v641, %v639
      %v676 = vpack.c.b16 %v644, %v642
      %v677 = vpack.c.b16 %v645, %v643
      %710 = vmatprep.subr.bf16.mxu0 %v661
      %711 = vmatpush1.bf16.msra.mxu0 %v660
      %712 = vmatprep.subr.bf16.mxu0 %v659
      %713 = vmatpush1.bf16.msra.mxu0 %v658
      %714 = vmatprep.subr.bf16.mxu0 %v657
      %715 = vmatpush1.bf16.msra.mxu0 %v656
      %716 = vmatprep.subr.bf16.mxu0 %v655
      %717 = vmatpush1.bf16.msra.mxu0 %v654
      %718 = vmatprep.subr.bf16.mxu0 %v653
      %719 = vmatpush1.bf16.msra.mxu0 %v652
      %720 = vmatprep.subr.bf16.mxu0 %v651
      %721 = vmatpush1.bf16.msra.mxu0 %v650
      %722 = vmatprep.subr.bf16.mxu0 %v649
      %723 = vmatpush1.bf16.msra.mxu0 %v648
      %724 = vmatprep.subr.bf16.mxu0 %v647
      %725 = vmatpush1.bf16.msra.mxu0 %v646
      %726 = vmatprep.subr.bf16.mxu0 %v677
      %727 = vmatpush2.bf16.msra.mxu0 %v676
      %728 = vmatprep.subr.bf16.mxu0 %v675
      %729 = vmatpush2.bf16.msra.mxu0 %v674
      %730 = vmatprep.subr.bf16.mxu0 %v673
      %731 = vmatpush2.bf16.msra.mxu0 %v672
      %732 = vmatprep.subr.bf16.mxu0 %v671
      %733 = vmatpush2.bf16.msra.mxu0 %v670
      %734 = vmatprep.subr.bf16.mxu0 %v669
      %735 = vmatpush2.bf16.msra.mxu0 %v668
      %736 = vmatprep.subr.bf16.mxu0 %v667
      %737 = vmatpush2.bf16.msra.mxu0 %v666
      %738 = vmatprep.subr.bf16.mxu0 %v665
      %739 = vmatpush2.bf16.msra.mxu0 %v664
      %740 = vmatprep.subr.bf16.mxu0 %v663
      %741 = vmatpush2.bf16.msra.mxu0 %v662
      %742 = vmatprep.mubr.bf16.mxu0 %v487
      %743 = vmatmul.mubr.bf16.gmra.mxu0 %v486
      %v744 = vpop.f32.mrf.mxu0
      %v745 = vadd.f32 0.0, %v744
      %v746 = vpop.f32.mrf.mxu0
      %v747 = vadd.f32 0.0, %v746
      %v748 = vpop.f32.mrf.mxu0
      %v749 = vadd.f32 0.0, %v748
      %v750 = vpop.f32.mrf.mxu0
      %v751 = vadd.f32 0.0, %v750
      %752 = vmatprep.mubr.bf16.mxu0 %v489
      %753 = vmatmul.mubr.bf16.gmra.mxu0 %v488
      %v754 = vpop.f32.mrf.mxu0
      %v755 = vadd.f32 0.0, %v754
      %v756 = vpop.f32.mrf.mxu0
      %v757 = vadd.f32 0.0, %v756
      %v758 = vpop.f32.mrf.mxu0
      %v759 = vadd.f32 0.0, %v758
      %v760 = vpop.f32.mrf.mxu0
      %v761 = vadd.f32 0.0, %v760
      %762 = vmatprep.mubr.bf16.mxu0 %v491
      %763 = vmatmul.mubr.bf16.gmra.mxu0 %v490
      %v764 = vpop.f32.mrf.mxu0
      %v765 = vadd.f32 0.0, %v764
      %v766 = vpop.f32.mrf.mxu0
      %v767 = vadd.f32 0.0, %v766
      %v768 = vpop.f32.mrf.mxu0
      %v769 = vadd.f32 0.0, %v768
      %v770 = vpop.f32.mrf.mxu0
      %v771 = vadd.f32 0.0, %v770
      %772 = vmatprep.mubr.bf16.mxu0 %v493
      %773 = vmatmul.mubr.bf16.gmra.mxu0 %v492
      %v774 = vpop.f32.mrf.mxu0
      %v775 = vadd.f32 0.0, %v774
      %v776 = vpop.f32.mrf.mxu0
      %v777 = vadd.f32 0.0, %v776
      %v778 = vpop.f32.mrf.mxu0
      %v779 = vadd.f32 0.0, %v778
      %v780 = vpop.f32.mrf.mxu0
      %v781 = vadd.f32 0.0, %v780
      %782 = vmatprep.mubr.bf16.mxu0 %v495
      %783 = vmatmul.mubr.bf16.gmra.mxu0 %v494
      %v784 = vpop.f32.mrf.mxu0
      %v785 = vadd.f32 0.0, %v784
      %v786 = vpop.f32.mrf.mxu0
      %v787 = vadd.f32 0.0, %v786
      %v788 = vpop.f32.mrf.mxu0
      %v789 = vadd.f32 0.0, %v788
      %v790 = vpop.f32.mrf.mxu0
      %v791 = vadd.f32 0.0, %v790
      %792 = vmatprep.mubr.bf16.mxu0 %v497
      %793 = vmatmul.mubr.bf16.gmra.mxu0 %v496
      %v794 = vpop.f32.mrf.mxu0
      %v795 = vadd.f32 0.0, %v794
      %v796 = vpop.f32.mrf.mxu0
      %v797 = vadd.f32 0.0, %v796
      %v798 = vpop.f32.mrf.mxu0
      %v799 = vadd.f32 0.0, %v798
      %v800 = vpop.f32.mrf.mxu0
      %v801 = vadd.f32 0.0, %v800
      %802 = vmatprep.mubr.bf16.mxu0 %v499
      %803 = vmatmul.mubr.bf16.gmra.mxu0 %v498
      %v804 = vpop.f32.mrf.mxu0
      %v805 = vadd.f32 0.0, %v804
      %v806 = vpop.f32.mrf.mxu0
      %v807 = vadd.f32 0.0, %v806
      %v808 = vpop.f32.mrf.mxu0
      %v809 = vadd.f32 0.0, %v808
      %v810 = vpop.f32.mrf.mxu0
      %v811 = vadd.f32 0.0, %v810
      %812 = vmatprep.mubr.bf16.mxu0 %v501
      %813 = vmatmul.mubr.bf16.gmra.mxu0 %v500
      %v814 = vpop.f32.mrf.mxu0
      %v815 = vadd.f32 0.0, %v814
      %v816 = vpop.f32.mrf.mxu0
      %v817 = vadd.f32 0.0, %v816
      %v818 = vpop.f32.mrf.mxu0
      %v819 = vadd.f32 0.0, %v818
      %v820 = vpop.f32.mrf.mxu0
      %v821 = vadd.f32 0.0, %v820
      %822 = vmatprep.mubr.bf16.mxu0 %v503
      %823 = vmatmul.mubr.bf16.gmra.mxu0 %v502
      %v824 = vpop.f32.mrf.mxu0
      %v825 = vadd.f32 0.0, %v824
      %v826 = vpop.f32.mrf.mxu0
      %v827 = vadd.f32 0.0, %v826
      %v828 = vpop.f32.mrf.mxu0
      %v829 = vadd.f32 0.0, %v828
      %v830 = vpop.f32.mrf.mxu0
      %v831 = vadd.f32 0.0, %v830
      %832 = vmatprep.mubr.bf16.mxu0 %v505
      %833 = vmatmul.mubr.bf16.gmra.mxu0 %v504
      %v834 = vpop.f32.mrf.mxu0
      %v835 = vadd.f32 0.0, %v834
      %v836 = vpop.f32.mrf.mxu0
      %v837 = vadd.f32 0.0, %v836
      %v838 = vpop.f32.mrf.mxu0
      %v839 = vadd.f32 0.0, %v838
      %v840 = vpop.f32.mrf.mxu0
      %v841 = vadd.f32 0.0, %v840
      %842 = vmatprep.mubr.bf16.mxu0 %v507
      %843 = vmatmul.mubr.bf16.gmra.mxu0 %v506
      %v844 = vpop.f32.mrf.mxu0
      %v845 = vadd.f32 0.0, %v844
      %v846 = vpop.f32.mrf.mxu0
      %v847 = vadd.f32 0.0, %v846
      %v848 = vpop.f32.mrf.mxu0
      %v849 = vadd.f32 0.0, %v848
      %v850 = vpop.f32.mrf.mxu0
      %v851 = vadd.f32 0.0, %v850
      %852 = vmatprep.mubr.bf16.mxu0 %v509
      %853 = vmatmul.mubr.bf16.gmra.mxu0 %v508
      %v854 = vpop.f32.mrf.mxu0
      %v855 = vadd.f32 0.0, %v854
      %v856 = vpop.f32.mrf.mxu0
      %v857 = vadd.f32 0.0, %v856
      %v858 = vpop.f32.mrf.mxu0
      %v859 = vadd.f32 0.0, %v858
      %v860 = vpop.f32.mrf.mxu0
      %v861 = vadd.f32 0.0, %v860
      %862 = vmatprep.mubr.bf16.mxu0 %v511
      %863 = vmatmul.mubr.bf16.gmra.mxu0 %v510
      %v864 = vpop.f32.mrf.mxu0
      %v865 = vadd.f32 0.0, %v864
      %v866 = vpop.f32.mrf.mxu0
      %v867 = vadd.f32 0.0, %v866
      %v868 = vpop.f32.mrf.mxu0
      %v869 = vadd.f32 0.0, %v868
      %v870 = vpop.f32.mrf.mxu0
      %v871 = vadd.f32 0.0, %v870
      %872 = vmatprep.mubr.bf16.mxu0 %v513
      %873 = vmatmul.mubr.bf16.gmra.mxu0 %v512
      %v874 = vpop.f32.mrf.mxu0
      %v875 = vadd.f32 0.0, %v874
      %v876 = vpop.f32.mrf.mxu0
      %v877 = vadd.f32 0.0, %v876
      %v878 = vpop.f32.mrf.mxu0
      %v879 = vadd.f32 0.0, %v878
      %v880 = vpop.f32.mrf.mxu0
      %v881 = vadd.f32 0.0, %v880
      %882 = vmatprep.mubr.bf16.mxu0 %v515
      %883 = vmatmul.mubr.bf16.gmra.mxu0 %v514
      %v884 = vpop.f32.mrf.mxu0
      %v885 = vadd.f32 0.0, %v884
      %v886 = vpop.f32.mrf.mxu0
      %v887 = vadd.f32 0.0, %v886
      %v888 = vpop.f32.mrf.mxu0
      %v889 = vadd.f32 0.0, %v888
      %v890 = vpop.f32.mrf.mxu0
      %v891 = vadd.f32 0.0, %v890
      %892 = vmatprep.mubr.bf16.mxu0 %v517
      %893 = vmatmul.mubr.bf16.gmra.mxu0 %v516
      %v894 = vpop.f32.mrf.mxu0
      %v895 = vadd.f32 0.0, %v894
      %v896 = vpop.f32.mrf.mxu0
      %v897 = vadd.f32 0.0, %v896
      %v898 = vpop.f32.mrf.mxu0
      %v899 = vadd.f32 0.0, %v898
      %v900 = vpop.f32.mrf.mxu0
      %v901 = vadd.f32 0.0, %v900
      %902 = vdwg.mxu0
      %v935 = vunpack.c.l.b16 %v255
      %v936 = vunpack.c.h.b16 %v255
      %v937 = vunpack.c.l.b16 %v256
      %v938 = vunpack.c.h.b16 %v256
      %v939 = vunpack.c.l.b16 %v257
      %v940 = vunpack.c.h.b16 %v257
      %v941 = vunpack.c.l.b16 %v258
      %v942 = vunpack.c.h.b16 %v258
      %v943 = vunpack.c.l.b16 %v259
      %v944 = vunpack.c.h.b16 %v259
      %v945 = vunpack.c.l.b16 %v260
      %v946 = vunpack.c.h.b16 %v260
      %v947 = vunpack.c.l.b16 %v261
      %v948 = vunpack.c.h.b16 %v261
      %v949 = vunpack.c.l.b16 %v262
      %v950 = vunpack.c.h.b16 %v262
      %v951 = vunpack.c.l.b16 %v263
      %v952 = vunpack.c.h.b16 %v263
      %v953 = vunpack.c.l.b16 %v264
      %v954 = vunpack.c.h.b16 %v264
      %v955 = vunpack.c.l.b16 %v265
      %v956 = vunpack.c.h.b16 %v265
      %v957 = vunpack.c.l.b16 %v266
      %v958 = vunpack.c.h.b16 %v266
      %v959 = vunpack.c.l.b16 %v267
      %v960 = vunpack.c.h.b16 %v267
      %v961 = vunpack.c.l.b16 %v268
      %v962 = vunpack.c.h.b16 %v268
      %v963 = vunpack.c.l.b16 %v269
      %v964 = vunpack.c.h.b16 %v269
      %v965 = vunpack.c.l.b16 %v270
      %v966 = vunpack.c.h.b16 %v270
      %v967 = vunpack.c.l.b16 %v271
      %v968 = vunpack.c.h.b16 %v271
      %v969 = vunpack.c.l.b16 %v272
      %v970 = vunpack.c.h.b16 %v272
      %v971 = vunpack.c.l.b16 %v273
      %v972 = vunpack.c.h.b16 %v273
      %v973 = vunpack.c.l.b16 %v274
      %v974 = vunpack.c.h.b16 %v274
      %v975 = vunpack.c.l.b16 %v275
      %v976 = vunpack.c.h.b16 %v275
      %v977 = vunpack.c.l.b16 %v276
      %v978 = vunpack.c.h.b16 %v276
      %v979 = vunpack.c.l.b16 %v277
      %v980 = vunpack.c.h.b16 %v277
      %v981 = vunpack.c.l.b16 %v278
      %v982 = vunpack.c.h.b16 %v278
      %v983 = vunpack.c.l.b16 %v279
      %v984 = vunpack.c.h.b16 %v279
      %v985 = vunpack.c.l.b16 %v280
      %v986 = vunpack.c.h.b16 %v280
      %v987 = vunpack.c.l.b16 %v281
      %v988 = vunpack.c.h.b16 %v281
      %v989 = vunpack.c.l.b16 %v282
      %v990 = vunpack.c.h.b16 %v282
      %v991 = vunpack.c.l.b16 %v283
      %v992 = vunpack.c.h.b16 %v283
      %v993 = vunpack.c.l.b16 %v284
      %v994 = vunpack.c.h.b16 %v284
      %v995 = vunpack.c.l.b16 %v285
      %v996 = vunpack.c.h.b16 %v285
      %v997 = vunpack.c.l.b16 %v286
      %v998 = vunpack.c.h.b16 %v286
      %v999 = vpack.c.b16 %v937, %v935
      %v1000 = vpack.c.b16 %v938, %v936
      %v1001 = vpack.c.b16 %v941, %v939
      %v1002 = vpack.c.b16 %v942, %v940
      %v1003 = vpack.c.b16 %v945, %v943
      %v1004 = vpack.c.b16 %v946, %v944
      %v1005 = vpack.c.b16 %v949, %v947
      %v1006 = vpack.c.b16 %v950, %v948
      %v1007 = vpack.c.b16 %v953, %v951
      %v1008 = vpack.c.b16 %v954, %v952
      %v1009 = vpack.c.b16 %v957, %v955
      %v1010 = vpack.c.b16 %v958, %v956
      %v1011 = vpack.c.b16 %v961, %v959
      %v1012 = vpack.c.b16 %v962, %v960
      %v1013 = vpack.c.b16 %v965, %v963
      %v1014 = vpack.c.b16 %v966, %v964
      %v1015 = vpack.c.b16 %v969, %v967
      %v1016 = vpack.c.b16 %v970, %v968
      %v1017 = vpack.c.b16 %v973, %v971
      %v1018 = vpack.c.b16 %v974, %v972
      %v1019 = vpack.c.b16 %v977, %v975
      %v1020 = vpack.c.b16 %v978, %v976
      %v1021 = vpack.c.b16 %v981, %v979
      %v1022 = vpack.c.b16 %v982, %v980
      %v1023 = vpack.c.b16 %v985, %v983
      %v1024 = vpack.c.b16 %v986, %v984
      %v1025 = vpack.c.b16 %v989, %v987
      %v1026 = vpack.c.b16 %v990, %v988
      %v1027 = vpack.c.b16 %v993, %v991
      %v1028 = vpack.c.b16 %v994, %v992
      %v1029 = vpack.c.b16 %v997, %v995
      %v1030 = vpack.c.b16 %v998, %v996
      %v1095 = vunpack.c.l.b16 %v287
      %v1096 = vunpack.c.h.b16 %v287
      %v1097 = vunpack.c.l.b16 %v288
      %v1098 = vunpack.c.h.b16 %v288
      %v1099 = vunpack.c.l.b16 %v289
      %v1100 = vunpack.c.h.b16 %v289
      %v1101 = vunpack.c.l.b16 %v290
      %v1102 = vunpack.c.h.b16 %v290
      %v1103 = vunpack.c.l.b16 %v291
      %v1104 = vunpack.c.h.b16 %v291
      %v1105 = vunpack.c.l.b16 %v292
      %v1106 = vunpack.c.h.b16 %v292
      %v1107 = vunpack.c.l.b16 %v293
      %v1108 = vunpack.c.h.b16 %v293
      %v1109 = vunpack.c.l.b16 %v294
      %v1110 = vunpack.c.h.b16 %v294
      %v1111 = vunpack.c.l.b16 %v295
      %v1112 = vunpack.c.h.b16 %v295
      %v1113 = vunpack.c.l.b16 %v296
      %v1114 = vunpack.c.h.b16 %v296
      %v1115 = vunpack.c.l.b16 %v297
      %v1116 = vunpack.c.h.b16 %v297
      %v1117 = vunpack.c.l.b16 %v298
      %v1118 = vunpack.c.h.b16 %v298
      %v1119 = vunpack.c.l.b16 %v299
      %v1120 = vunpack.c.h.b16 %v299
      %v1121 = vunpack.c.l.b16 %v300
      %v1122 = vunpack.c.h.b16 %v300
      %v1123 = vunpack.c.l.b16 %v301
      %v1124 = vunpack.c.h.b16 %v301
      %v1125 = vunpack.c.l.b16 %v302
      %v1126 = vunpack.c.h.b16 %v302
      %v1127 = vunpack.c.l.b16 %v303
      %v1128 = vunpack.c.h.b16 %v303
      %v1129 = vunpack.c.l.b16 %v304
      %v1130 = vunpack.c.h.b16 %v304
      %v1131 = vunpack.c.l.b16 %v305
      %v1132 = vunpack.c.h.b16 %v305
      %v1133 = vunpack.c.l.b16 %v306
      %v1134 = vunpack.c.h.b16 %v306
      %v1135 = vunpack.c.l.b16 %v307
      %v1136 = vunpack.c.h.b16 %v307
      %v1137 = vunpack.c.l.b16 %v308
      %v1138 = vunpack.c.h.b16 %v308
      %v1139 = vunpack.c.l.b16 %v309
      %v1140 = vunpack.c.h.b16 %v309
      %v1141 = vunpack.c.l.b16 %v310
      %v1142 = vunpack.c.h.b16 %v310
      %v1143 = vunpack.c.l.b16 %v311
      %v1144 = vunpack.c.h.b16 %v311
      %v1145 = vunpack.c.l.b16 %v312
      %v1146 = vunpack.c.h.b16 %v312
      %v1147 = vunpack.c.l.b16 %v313
      %v1148 = vunpack.c.h.b16 %v313
      %v1149 = vunpack.c.l.b16 %v314
      %v1150 = vunpack.c.h.b16 %v314
      %v1151 = vunpack.c.l.b16 %v315
      %v1152 = vunpack.c.h.b16 %v315
      %v1153 = vunpack.c.l.b16 %v316
      %v1154 = vunpack.c.h.b16 %v316
      %v1155 = vunpack.c.l.b16 %v317
      %v1156 = vunpack.c.h.b16 %v317
      %v1157 = vunpack.c.l.b16 %v318
      %v1158 = vunpack.c.h.b16 %v318
      %v1159 = vpack.c.b16 %v1097, %v1095
      %v1160 = vpack.c.b16 %v1098, %v1096
      %v1161 = vpack.c.b16 %v1101, %v1099
      %v1162 = vpack.c.b16 %v1102, %v1100
      %v1163 = vpack.c.b16 %v1105, %v1103
      %v1164 = vpack.c.b16 %v1106, %v1104
      %v1165 = vpack.c.b16 %v1109, %v1107
      %v1166 = vpack.c.b16 %v1110, %v1108
      %v1167 = vpack.c.b16 %v1113, %v1111
      %v1168 = vpack.c.b16 %v1114, %v1112
      %v1169 = vpack.c.b16 %v1117, %v1115
      %v1170 = vpack.c.b16 %v1118, %v1116
      %v1171 = vpack.c.b16 %v1121, %v1119
      %v1172 = vpack.c.b16 %v1122, %v1120
      %v1173 = vpack.c.b16 %v1125, %v1123
      %v1174 = vpack.c.b16 %v1126, %v1124
      %v1175 = vpack.c.b16 %v1129, %v1127
      %v1176 = vpack.c.b16 %v1130, %v1128
      %v1177 = vpack.c.b16 %v1133, %v1131
      %v1178 = vpack.c.b16 %v1134, %v1132
      %v1179 = vpack.c.b16 %v1137, %v1135
      %v1180 = vpack.c.b16 %v1138, %v1136
      %v1181 = vpack.c.b16 %v1141, %v1139
      %v1182 = vpack.c.b16 %v1142, %v1140
      %v1183 = vpack.c.b16 %v1145, %v1143
      %v1184 = vpack.c.b16 %v1146, %v1144
      %v1185 = vpack.c.b16 %v1149, %v1147
      %v1186 = vpack.c.b16 %v1150, %v1148
      %v1187 = vpack.c.b16 %v1153, %v1151
      %v1188 = vpack.c.b16 %v1154, %v1152
      %v1189 = vpack.c.b16 %v1157, %v1155
      %v1190 = vpack.c.b16 %v1158, %v1156
      %1223 = vmatprep.subr.bf16.mxu0 %v1174
      %1224 = vmatpush1.bf16.msra.mxu0 %v1173
      %1225 = vmatprep.subr.bf16.mxu0 %v1172
      %1226 = vmatpush1.bf16.msra.mxu0 %v1171
      %1227 = vmatprep.subr.bf16.mxu0 %v1170
      %1228 = vmatpush1.bf16.msra.mxu0 %v1169
      %1229 = vmatprep.subr.bf16.mxu0 %v1168
      %1230 = vmatpush1.bf16.msra.mxu0 %v1167
      %1231 = vmatprep.subr.bf16.mxu0 %v1166
      %1232 = vmatpush1.bf16.msra.mxu0 %v1165
      %1233 = vmatprep.subr.bf16.mxu0 %v1164
      %1234 = vmatpush1.bf16.msra.mxu0 %v1163
      %1235 = vmatprep.subr.bf16.mxu0 %v1162
      %1236 = vmatpush1.bf16.msra.mxu0 %v1161
      %1237 = vmatprep.subr.bf16.mxu0 %v1160
      %1238 = vmatpush1.bf16.msra.mxu0 %v1159
      %1239 = vmatprep.subr.bf16.mxu0 %v1190
      %1240 = vmatpush2.bf16.msra.mxu0 %v1189
      %1241 = vmatprep.subr.bf16.mxu0 %v1188
      %1242 = vmatpush2.bf16.msra.mxu0 %v1187
      %1243 = vmatprep.subr.bf16.mxu0 %v1186
      %1244 = vmatpush2.bf16.msra.mxu0 %v1185
      %1245 = vmatprep.subr.bf16.mxu0 %v1184
      %1246 = vmatpush2.bf16.msra.mxu0 %v1183
      %1247 = vmatprep.subr.bf16.mxu0 %v1182
      %1248 = vmatpush2.bf16.msra.mxu0 %v1181
      %1249 = vmatprep.subr.bf16.mxu0 %v1180
      %1250 = vmatpush2.bf16.msra.mxu0 %v1179
      %1251 = vmatprep.subr.bf16.mxu0 %v1178
      %1252 = vmatpush2.bf16.msra.mxu0 %v1177
      %1253 = vmatprep.subr.bf16.mxu0 %v1176
      %1254 = vmatpush2.bf16.msra.mxu0 %v1175
      %1255 = vmatprep.mubr.bf16.mxu0 %v1000
      %1256 = vmatmul.mubr.bf16.gmra.mxu0 %v999
      %v1257 = vpop.f32.mrf.mxu0
      %v1258 = vadd.f32 %v745, %v1257
      %v1259 = vpop.f32.mrf.mxu0
      %v1260 = vadd.f32 %v747, %v1259
      %v1261 = vpop.f32.mrf.mxu0
      %v1262 = vadd.f32 %v749, %v1261
      %v1263 = vpop.f32.mrf.mxu0
      %v1264 = vadd.f32 %v751, %v1263
      %1265 = vmatprep.mubr.bf16.mxu0 %v1002
      %1266 = vmatmul.mubr.bf16.gmra.mxu0 %v1001
      %v1267 = vpop.f32.mrf.mxu0
      %v1268 = vadd.f32 %v755, %v1267
      %v1269 = vpop.f32.mrf.mxu0
      %v1270 = vadd.f32 %v757, %v1269
      %v1271 = vpop.f32.mrf.mxu0
      %v1272 = vadd.f32 %v759, %v1271
      %v1273 = vpop.f32.mrf.mxu0
      %v1274 = vadd.f32 %v761, %v1273
      %1275 = vmatprep.mubr.bf16.mxu0 %v1004
      %1276 = vmatmul.mubr.bf16.gmra.mxu0 %v1003
      %v1277 = vpop.f32.mrf.mxu0
      %v1278 = vadd.f32 %v765, %v1277
      %v1279 = vpop.f32.mrf.mxu0
      %v1280 = vadd.f32 %v767, %v1279
      %v1281 = vpop.f32.mrf.mxu0
      %v1282 = vadd.f32 %v769, %v1281
      %v1283 = vpop.f32.mrf.mxu0
      %v1284 = vadd.f32 %v771, %v1283
      %1285 = vmatprep.mubr.bf16.mxu0 %v1006
      %1286 = vmatmul.mubr.bf16.gmra.mxu0 %v1005
      %v1287 = vpop.f32.mrf.mxu0
      %v1288 = vadd.f32 %v775, %v1287
      %v1289 = vpop.f32.mrf.mxu0
      %v1290 = vadd.f32 %v777, %v1289
      %v1291 = vpop.f32.mrf.mxu0
      %v1292 = vadd.f32 %v779, %v1291
      %v1293 = vpop.f32.mrf.mxu0
      %v1294 = vadd.f32 %v781, %v1293
      %1295 = vmatprep.mubr.bf16.mxu0 %v1008
      %1296 = vmatmul.mubr.bf16.gmra.mxu0 %v1007
      %v1297 = vpop.f32.mrf.mxu0
      %v1298 = vadd.f32 %v785, %v1297
      %v1299 = vpop.f32.mrf.mxu0
      %v1300 = vadd.f32 %v787, %v1299
      %v1301 = vpop.f32.mrf.mxu0
      %v1302 = vadd.f32 %v789, %v1301
      %v1303 = vpop.f32.mrf.mxu0
      %v1304 = vadd.f32 %v791, %v1303
      %1305 = vmatprep.mubr.bf16.mxu0 %v1010
      %1306 = vmatmul.mubr.bf16.gmra.mxu0 %v1009
      %v1307 = vpop.f32.mrf.mxu0
      %v1308 = vadd.f32 %v795, %v1307
      %v1309 = vpop.f32.mrf.mxu0
      %v1310 = vadd.f32 %v797, %v1309
      %v1311 = vpop.f32.mrf.mxu0
      %v1312 = vadd.f32 %v799, %v1311
      %v1313 = vpop.f32.mrf.mxu0
      %v1314 = vadd.f32 %v801, %v1313
      %1315 = vmatprep.mubr.bf16.mxu0 %v1012
      %1316 = vmatmul.mubr.bf16.gmra.mxu0 %v1011
      %v1317 = vpop.f32.mrf.mxu0
      %v1318 = vadd.f32 %v805, %v1317
      %v1319 = vpop.f32.mrf.mxu0
      %v1320 = vadd.f32 %v807, %v1319
      %v1321 = vpop.f32.mrf.mxu0
      %v1322 = vadd.f32 %v809, %v1321
      %v1323 = vpop.f32.mrf.mxu0
      %v1324 = vadd.f32 %v811, %v1323
      %1325 = vmatprep.mubr.bf16.mxu0 %v1014
      %1326 = vmatmul.mubr.bf16.gmra.mxu0 %v1013
      %v1327 = vpop.f32.mrf.mxu0
      %v1328 = vadd.f32 %v815, %v1327
      %v1329 = vpop.f32.mrf.mxu0
      %v1330 = vadd.f32 %v817, %v1329
      %v1331 = vpop.f32.mrf.mxu0
      %v1332 = vadd.f32 %v819, %v1331
      %v1333 = vpop.f32.mrf.mxu0
      %v1334 = vadd.f32 %v821, %v1333
      %1335 = vmatprep.mubr.bf16.mxu0 %v1016
      %1336 = vmatmul.mubr.bf16.gmra.mxu0 %v1015
      %v1337 = vpop.f32.mrf.mxu0
      %v1338 = vadd.f32 %v825, %v1337
      %v1339 = vpop.f32.mrf.mxu0
      %v1340 = vadd.f32 %v827, %v1339
      %v1341 = vpop.f32.mrf.mxu0
      %v1342 = vadd.f32 %v829, %v1341
      %v1343 = vpop.f32.mrf.mxu0
      %v1344 = vadd.f32 %v831, %v1343
      %1345 = vmatprep.mubr.bf16.mxu0 %v1018
      %1346 = vmatmul.mubr.bf16.gmra.mxu0 %v1017
      %v1347 = vpop.f32.mrf.mxu0
      %v1348 = vadd.f32 %v835, %v1347
      %v1349 = vpop.f32.mrf.mxu0
      %v1350 = vadd.f32 %v837, %v1349
      %v1351 = vpop.f32.mrf.mxu0
      %v1352 = vadd.f32 %v839, %v1351
      %v1353 = vpop.f32.mrf.mxu0
      %v1354 = vadd.f32 %v841, %v1353
      %1355 = vmatprep.mubr.bf16.mxu0 %v1020
      %1356 = vmatmul.mubr.bf16.gmra.mxu0 %v1019
      %v1357 = vpop.f32.mrf.mxu0
      %v1358 = vadd.f32 %v845, %v1357
      %v1359 = vpop.f32.mrf.mxu0
      %v1360 = vadd.f32 %v847, %v1359
      %v1361 = vpop.f32.mrf.mxu0
      %v1362 = vadd.f32 %v849, %v1361
      %v1363 = vpop.f32.mrf.mxu0
      %v1364 = vadd.f32 %v851, %v1363
      %1365 = vmatprep.mubr.bf16.mxu0 %v1022
      %1366 = vmatmul.mubr.bf16.gmra.mxu0 %v1021
      %v1367 = vpop.f32.mrf.mxu0
      %v1368 = vadd.f32 %v855, %v1367
      %v1369 = vpop.f32.mrf.mxu0
      %v1370 = vadd.f32 %v857, %v1369
      %v1371 = vpop.f32.mrf.mxu0
      %v1372 = vadd.f32 %v859, %v1371
      %v1373 = vpop.f32.mrf.mxu0
      %v1374 = vadd.f32 %v861, %v1373
      %1375 = vmatprep.mubr.bf16.mxu0 %v1024
      %1376 = vmatmul.mubr.bf16.gmra.mxu0 %v1023
      %v1377 = vpop.f32.mrf.mxu0
      %v1378 = vadd.f32 %v865, %v1377
      %v1379 = vpop.f32.mrf.mxu0
      %v1380 = vadd.f32 %v867, %v1379
      %v1381 = vpop.f32.mrf.mxu0
      %v1382 = vadd.f32 %v869, %v1381
      %v1383 = vpop.f32.mrf.mxu0
      %v1384 = vadd.f32 %v871, %v1383
      %1385 = vmatprep.mubr.bf16.mxu0 %v1026
      %1386 = vmatmul.mubr.bf16.gmra.mxu0 %v1025
      %v1387 = vpop.f32.mrf.mxu0
      %v1388 = vadd.f32 %v875, %v1387
      %v1389 = vpop.f32.mrf.mxu0
      %v1390 = vadd.f32 %v877, %v1389
      %v1391 = vpop.f32.mrf.mxu0
      %v1392 = vadd.f32 %v879, %v1391
      %v1393 = vpop.f32.mrf.mxu0
      %v1394 = vadd.f32 %v881, %v1393
      %1395 = vmatprep.mubr.bf16.mxu0 %v1028
      %1396 = vmatmul.mubr.bf16.gmra.mxu0 %v1027
      %v1397 = vpop.f32.mrf.mxu0
      %v1398 = vadd.f32 %v885, %v1397
      %v1399 = vpop.f32.mrf.mxu0
      %v1400 = vadd.f32 %v887, %v1399
      %v1401 = vpop.f32.mrf.mxu0
      %v1402 = vadd.f32 %v889, %v1401
      %v1403 = vpop.f32.mrf.mxu0
      %v1404 = vadd.f32 %v891, %v1403
      %1405 = vmatprep.mubr.bf16.mxu0 %v1030
      %1406 = vmatmul.mubr.bf16.gmra.mxu0 %v1029
      %v1407 = vpop.f32.mrf.mxu0
      %v1408 = vadd.f32 %v895, %v1407
      %v1409 = vpop.f32.mrf.mxu0
      %v1410 = vadd.f32 %v897, %v1409
      %v1411 = vpop.f32.mrf.mxu0
      %v1412 = vadd.f32 %v899, %v1411
      %v1413 = vpop.f32.mrf.mxu0
      %v1414 = vadd.f32 %v901, %v1413
      %1415 = vdwg.mxu0
      %s1416 = sadd.s32 %s249, 32
      %s1417 = sshra.s32 %s1416, 3
      %s1418 = sand.u32 %s1416, 7
      %s1419 = smul.u32 %s1417, 2
      %s1420 = smul.addr %s1419, 4
      %s1421 = scalar_lea.vmem %s237, %s1420
      %v1422 = vld [vmem:[%s1421] sm:$0xff]
      %v1423 = vld [vmem:[%s1421 + $0x8] sm:$0xff]
      %v1424 = vld [vmem:[%s1421 + $0x10] sm:$0xff]
      %v1425 = vld [vmem:[%s1421 + $0x18] sm:$0xff]
      %v1426 = vld [vmem:[%s1421 + $0x20] sm:$0xff]
      %v1427 = vld [vmem:[%s1421 + $0x28] sm:$0xff]
      %v1428 = vld [vmem:[%s1421 + $0x30] sm:$0xff]
      %v1429 = vld [vmem:[%s1421 + $0x38] sm:$0xff]
      %v1430 = vld [vmem:[%s1421 + $0x40] sm:$0xff]
      %v1431 = vld [vmem:[%s1421 + $0x48] sm:$0xff]
      %v1432 = vld [vmem:[%s1421 + $0x50] sm:$0xff]
      %v1433 = vld [vmem:[%s1421 + $0x58] sm:$0xff]
      %v1434 = vld [vmem:[%s1421 + $0x60] sm:$0xff]
      %v1435 = vld [vmem:[%s1421 + $0x68] sm:$0xff]
      %v1436 = vld [vmem:[%s1421 + $0x70] sm:$0xff]
      %v1437 = vld [vmem:[%s1421 + $0x78] sm:$0xff]
      %v1438 = vld [vmem:[%s1421 + $0x80] sm:$0xff]
      %v1439 = vld [vmem:[%s1421 + $0x88] sm:$0xff]
      %v1440 = vld [vmem:[%s1421 + $0x90] sm:$0xff]
      %v1441 = vld [vmem:[%s1421 + $0x98] sm:$0xff]
      %v1442 = vld [vmem:[%s1421 + $0xa0] sm:$0xff]
      %v1443 = vld [vmem:[%s1421 + $0xa8] sm:$0xff]
      %v1444 = vld [vmem:[%s1421 + $0xb0] sm:$0xff]
      %v1445 = vld [vmem:[%s1421 + $0xb8] sm:$0xff]
      %v1446 = vld [vmem:[%s1421 + $0xc0] sm:$0xff]
      %v1447 = vld [vmem:[%s1421 + $0xc8] sm:$0xff]
      %v1448 = vld [vmem:[%s1421 + $0xd0] sm:$0xff]
      %v1449 = vld [vmem:[%s1421 + $0xd8] sm:$0xff]
      %v1450 = vld [vmem:[%s1421 + $0xe0] sm:$0xff]
      %v1451 = vld [vmem:[%s1421 + $0xe8] sm:$0xff]
      %v1452 = vld [vmem:[%s1421 + $0xf0] sm:$0xff]
      %v1453 = vld [vmem:[%s1421 + $0xf8] sm:$0xff]
      %s1454 = scalar_lea.vmem %s1, 512
      %v1455 = vld [vmem:[%s1454] sm:$0xff]
      %v1456 = vld [vmem:[%s1454 + $0x8] sm:$0xff]
      %v1457 = vld [vmem:[%s1454 + $0x10] sm:$0xff]
      %v1458 = vld [vmem:[%s1454 + $0x18] sm:$0xff]
      %v1459 = vld [vmem:[%s1454 + $0x20] sm:$0xff]
      %v1460 = vld [vmem:[%s1454 + $0x28] sm:$0xff]
      %v1461 = vld [vmem:[%s1454 + $0x30] sm:$0xff]
      %v1462 = vld [vmem:[%s1454 + $0x38] sm:$0xff]
      %v1463 = vld [vmem:[%s1454 + $0x40] sm:$0xff]
      %v1464 = vld [vmem:[%s1454 + $0x48] sm:$0xff]
      %v1465 = vld [vmem:[%s1454 + $0x50] sm:$0xff]
      %v1466 = vld [vmem:[%s1454 + $0x58] sm:$0xff]
      %v1467 = vld [vmem:[%s1454 + $0x60] sm:$0xff]
      %v1468 = vld [vmem:[%s1454 + $0x68] sm:$0xff]
      %v1469 = vld [vmem:[%s1454 + $0x70] sm:$0xff]
      %v1470 = vld [vmem:[%s1454 + $0x78] sm:$0xff]
      %v1471 = vld [vmem:[%s1454 + $0x80] sm:$0xff]
      %v1472 = vld [vmem:[%s1454 + $0x88] sm:$0xff]
      %v1473 = vld [vmem:[%s1454 + $0x90] sm:$0xff]
      %v1474 = vld [vmem:[%s1454 + $0x98] sm:$0xff]
      %v1475 = vld [vmem:[%s1454 + $0xa0] sm:$0xff]
      %v1476 = vld [vmem:[%s1454 + $0xa8] sm:$0xff]
      %v1477 = vld [vmem:[%s1454 + $0xb0] sm:$0xff]
      %v1478 = vld [vmem:[%s1454 + $0xb8] sm:$0xff]
      %v1479 = vld [vmem:[%s1454 + $0xc0] sm:$0xff]
      %v1480 = vld [vmem:[%s1454 + $0xc8] sm:$0xff]
      %v1481 = vld [vmem:[%s1454 + $0xd0] sm:$0xff]
      %v1482 = vld [vmem:[%s1454 + $0xd8] sm:$0xff]
      %v1483 = vld [vmem:[%s1454 + $0xe0] sm:$0xff]
      %v1484 = vld [vmem:[%s1454 + $0xe8] sm:$0xff]
      %v1485 = vld [vmem:[%s1454 + $0xf0] sm:$0xff]
      %v1486 = vld [vmem:[%s1454 + $0xf8] sm:$0xff]
      %v1519 = vunpack.c.l.b16 %v1422
      %v1520 = vunpack.c.h.b16 %v1422
      %v1521 = vunpack.c.l.b16 %v1423
      %v1522 = vunpack.c.h.b16 %v1423
      %v1523 = vunpack.c.l.b16 %v1424
      %v1524 = vunpack.c.h.b16 %v1424
      %v1525 = vunpack.c.l.b16 %v1425
      %v1526 = vunpack.c.h.b16 %v1425
      %v1527 = vunpack.c.l.b16 %v1426
      %v1528 = vunpack.c.h.b16 %v1426
      %v1529 = vunpack.c.l.b16 %v1427
      %v1530 = vunpack.c.h.b16 %v1427
      %v1531 = vunpack.c.l.b16 %v1428
      %v1532 = vunpack.c.h.b16 %v1428
      %v1533 = vunpack.c.l.b16 %v1429
      %v1534 = vunpack.c.h.b16 %v1429
      %v1535 = vunpack.c.l.b16 %v1430
      %v1536 = vunpack.c.h.b16 %v1430
      %v1537 = vunpack.c.l.b16 %v1431
      %v1538 = vunpack.c.h.b16 %v1431
      %v1539 = vunpack.c.l.b16 %v1432
      %v1540 = vunpack.c.h.b16 %v1432
      %v1541 = vunpack.c.l.b16 %v1433
      %v1542 = vunpack.c.h.b16 %v1433
      %v1543 = vunpack.c.l.b16 %v1434
      %v1544 = vunpack.c.h.b16 %v1434
      %v1545 = vunpack.c.l.b16 %v1435
      %v1546 = vunpack.c.h.b16 %v1435
      %v1547 = vunpack.c.l.b16 %v1436
      %v1548 = vunpack.c.h.b16 %v1436
      %v1549 = vunpack.c.l.b16 %v1437
      %v1550 = vunpack.c.h.b16 %v1437
      %v1551 = vunpack.c.l.b16 %v1438
      %v1552 = vunpack.c.h.b16 %v1438
      %v1553 = vunpack.c.l.b16 %v1439
      %v1554 = vunpack.c.h.b16 %v1439
      %v1555 = vunpack.c.l.b16 %v1440
      %v1556 = vunpack.c.h.b16 %v1440
      %v1557 = vunpack.c.l.b16 %v1441
      %v1558 = vunpack.c.h.b16 %v1441
      %v1559 = vunpack.c.l.b16 %v1442
      %v1560 = vunpack.c.h.b16 %v1442
      %v1561 = vunpack.c.l.b16 %v1443
      %v1562 = vunpack.c.h.b16 %v1443
      %v1563 = vunpack.c.l.b16 %v1444
      %v1564 = vunpack.c.h.b16 %v1444
      %v1565 = vunpack.c.l.b16 %v1445
      %v1566 = vunpack.c.h.b16 %v1445
      %v1567 = vunpack.c.l.b16 %v1446
      %v1568 = vunpack.c.h.b16 %v1446
      %v1569 = vunpack.c.l.b16 %v1447
      %v1570 = vunpack.c.h.b16 %v1447
      %v1571 = vunpack.c.l.b16 %v1448
      %v1572 = vunpack.c.h.b16 %v1448
      %v1573 = vunpack.c.l.b16 %v1449
      %v1574 = vunpack.c.h.b16 %v1449
      %v1575 = vunpack.c.l.b16 %v1450
      %v1576 = vunpack.c.h.b16 %v1450
      %v1577 = vunpack.c.l.b16 %v1451
      %v1578 = vunpack.c.h.b16 %v1451
      %v1579 = vunpack.c.l.b16 %v1452
      %v1580 = vunpack.c.h.b16 %v1452
      %v1581 = vunpack.c.l.b16 %v1453
      %v1582 = vunpack.c.h.b16 %v1453
      %v1583 = vpack.c.b16 %v1521, %v1519
      %v1584 = vpack.c.b16 %v1522, %v1520
      %v1585 = vpack.c.b16 %v1525, %v1523
      %v1586 = vpack.c.b16 %v1526, %v1524
      %v1587 = vpack.c.b16 %v1529, %v1527
      %v1588 = vpack.c.b16 %v1530, %v1528
      %v1589 = vpack.c.b16 %v1533, %v1531
      %v1590 = vpack.c.b16 %v1534, %v1532
      %v1591 = vpack.c.b16 %v1537, %v1535
      %v1592 = vpack.c.b16 %v1538, %v1536
      %v1593 = vpack.c.b16 %v1541, %v1539
      %v1594 = vpack.c.b16 %v1542, %v1540
      %v1595 = vpack.c.b16 %v1545, %v1543
      %v1596 = vpack.c.b16 %v1546, %v1544
      %v1597 = vpack.c.b16 %v1549, %v1547
      %v1598 = vpack.c.b16 %v1550, %v1548
      %v1599 = vpack.c.b16 %v1553, %v1551
      %v1600 = vpack.c.b16 %v1554, %v1552
      %v1601 = vpack.c.b16 %v1557, %v1555
      %v1602 = vpack.c.b16 %v1558, %v1556
      %v1603 = vpack.c.b16 %v1561, %v1559
      %v1604 = vpack.c.b16 %v1562, %v1560
      %v1605 = vpack.c.b16 %v1565, %v1563
      %v1606 = vpack.c.b16 %v1566, %v1564
      %v1607 = vpack.c.b16 %v1569, %v1567
      %v1608 = vpack.c.b16 %v1570, %v1568
      %v1609 = vpack.c.b16 %v1573, %v1571
      %v1610 = vpack.c.b16 %v1574, %v1572
      %v1611 = vpack.c.b16 %v1577, %v1575
      %v1612 = vpack.c.b16 %v1578, %v1576
      %v1613 = vpack.c.b16 %v1581, %v1579
      %v1614 = vpack.c.b16 %v1582, %v1580
      %v1679 = vunpack.c.l.b16 %v1455
      %v1680 = vunpack.c.h.b16 %v1455
      %v1681 = vunpack.c.l.b16 %v1456
      %v1682 = vunpack.c.h.b16 %v1456
      %v1683 = vunpack.c.l.b16 %v1457
      %v1684 = vunpack.c.h.b16 %v1457
      %v1685 = vunpack.c.l.b16 %v1458
      %v1686 = vunpack.c.h.b16 %v1458
      %v1687 = vunpack.c.l.b16 %v1459
      %v1688 = vunpack.c.h.b16 %v1459
      %v1689 = vunpack.c.l.b16 %v1460
      %v1690 = vunpack.c.h.b16 %v1460
      %v1691 = vunpack.c.l.b16 %v1461
      %v1692 = vunpack.c.h.b16 %v1461
      %v1693 = vunpack.c.l.b16 %v1462
      %v1694 = vunpack.c.h.b16 %v1462
      %v1695 = vunpack.c.l.b16 %v1463
      %v1696 = vunpack.c.h.b16 %v1463
      %v1697 = vunpack.c.l.b16 %v1464
      %v1698 = vunpack.c.h.b16 %v1464
      %v1699 = vunpack.c.l.b16 %v1465
      %v1700 = vunpack.c.h.b16 %v1465
      %v1701 = vunpack.c.l.b16 %v1466
      %v1702 = vunpack.c.h.b16 %v1466
      %v1703 = vunpack.c.l.b16 %v1467
      %v1704 = vunpack.c.h.b16 %v1467
      %v1705 = vunpack.c.l.b16 %v1468
      %v1706 = vunpack.c.h.b16 %v1468
      %v1707 = vunpack.c.l.b16 %v1469
      %v1708 = vunpack.c.h.b16 %v1469
      %v1709 = vunpack.c.l.b16 %v1470
      %v1710 = vunpack.c.h.b16 %v1470
      %v1711 = vunpack.c.l.b16 %v1471
      %v1712 = vunpack.c.h.b16 %v1471
      %v1713 = vunpack.c.l.b16 %v1472
      %v1714 = vunpack.c.h.b16 %v1472
      %v1715 = vunpack.c.l.b16 %v1473
      %v1716 = vunpack.c.h.b16 %v1473
      %v1717 = vunpack.c.l.b16 %v1474
      %v1718 = vunpack.c.h.b16 %v1474
      %v1719 = vunpack.c.l.b16 %v1475
      %v1720 = vunpack.c.h.b16 %v1475
      %v1721 = vunpack.c.l.b16 %v1476
      %v1722 = vunpack.c.h.b16 %v1476
      %v1723 = vunpack.c.l.b16 %v1477
      %v1724 = vunpack.c.h.b16 %v1477
      %v1725 = vunpack.c.l.b16 %v1478
      %v1726 = vunpack.c.h.b16 %v1478
      %v1727 = vunpack.c.l.b16 %v1479
      %v1728 = vunpack.c.h.b16 %v1479
      %v1729 = vunpack.c.l.b16 %v1480
      %v1730 = vunpack.c.h.b16 %v1480
      %v1731 = vunpack.c.l.b16 %v1481
      %v1732 = vunpack.c.h.b16 %v1481
      %v1733 = vunpack.c.l.b16 %v1482
      %v1734 = vunpack.c.h.b16 %v1482
      %v1735 = vunpack.c.l.b16 %v1483
      %v1736 = vunpack.c.h.b16 %v1483
      %v1737 = vunpack.c.l.b16 %v1484
      %v1738 = vunpack.c.h.b16 %v1484
      %v1739 = vunpack.c.l.b16 %v1485
      %v1740 = vunpack.c.h.b16 %v1485
      %v1741 = vunpack.c.l.b16 %v1486
      %v1742 = vunpack.c.h.b16 %v1486
      %v1743 = vpack.c.b16 %v1681, %v1679
      %v1744 = vpack.c.b16 %v1682, %v1680
      %v1745 = vpack.c.b16 %v1685, %v1683
      %v1746 = vpack.c.b16 %v1686, %v1684
      %v1747 = vpack.c.b16 %v1689, %v1687
      %v1748 = vpack.c.b16 %v1690, %v1688
      %v1749 = vpack.c.b16 %v1693, %v1691
      %v1750 = vpack.c.b16 %v1694, %v1692
      %v1751 = vpack.c.b16 %v1697, %v1695
      %v1752 = vpack.c.b16 %v1698, %v1696
      %v1753 = vpack.c.b16 %v1701, %v1699
      %v1754 = vpack.c.b16 %v1702, %v1700
      %v1755 = vpack.c.b16 %v1705, %v1703
      %v1756 = vpack.c.b16 %v1706, %v1704
      %v1757 = vpack.c.b16 %v1709, %v1707
      %v1758 = vpack.c.b16 %v1710, %v1708
      %v1759 = vpack.c.b16 %v1713, %v1711
      %v1760 = vpack.c.b16 %v1714, %v1712
      %v1761 = vpack.c.b16 %v1717, %v1715
      %v1762 = vpack.c.b16 %v1718, %v1716
      %v1763 = vpack.c.b16 %v1721, %v1719
      %v1764 = vpack.c.b16 %v1722, %v1720
      %v1765 = vpack.c.b16 %v1725, %v1723
      %v1766 = vpack.c.b16 %v1726, %v1724
      %v1767 = vpack.c.b16 %v1729, %v1727
      %v1768 = vpack.c.b16 %v1730, %v1728
      %v1769 = vpack.c.b16 %v1733, %v1731
      %v1770 = vpack.c.b16 %v1734, %v1732
      %v1771 = vpack.c.b16 %v1737, %v1735
      %v1772 = vpack.c.b16 %v1738, %v1736
      %v1773 = vpack.c.b16 %v1741, %v1739
      %v1774 = vpack.c.b16 %v1742, %v1740
      %1807 = vmatprep.subr.bf16.mxu0 %v1758
      %1808 = vmatpush1.bf16.msra.mxu0 %v1757
      %1809 = vmatprep.subr.bf16.mxu0 %v1756
      %1810 = vmatpush1.bf16.msra.mxu0 %v1755
      %1811 = vmatprep.subr.bf16.mxu0 %v1754
      %1812 = vmatpush1.bf16.msra.mxu0 %v1753
      %1813 = vmatprep.subr.bf16.mxu0 %v1752
      %1814 = vmatpush1.bf16.msra.mxu0 %v1751
      %1815 = vmatprep.subr.bf16.mxu0 %v1750
      %1816 = vmatpush1.bf16.msra.mxu0 %v1749
      %1817 = vmatprep.subr.bf16.mxu0 %v1748
      %1818 = vmatpush1.bf16.msra.mxu0 %v1747
      %1819 = vmatprep.subr.bf16.mxu0 %v1746
      %1820 = vmatpush1.bf16.msra.mxu0 %v1745
      %1821 = vmatprep.subr.bf16.mxu0 %v1744
      %1822 = vmatpush1.bf16.msra.mxu0 %v1743
      %1823 = vmatprep.subr.bf16.mxu0 %v1774
      %1824 = vmatpush2.bf16.msra.mxu0 %v1773
      %1825 = vmatprep.subr.bf16.mxu0 %v1772
      %1826 = vmatpush2.bf16.msra.mxu0 %v1771
      %1827 = vmatprep.subr.bf16.mxu0 %v1770
      %1828 = vmatpush2.bf16.msra.mxu0 %v1769
      %1829 = vmatprep.subr.bf16.mxu0 %v1768
      %1830 = vmatpush2.bf16.msra.mxu0 %v1767
      %1831 = vmatprep.subr.bf16.mxu0 %v1766
      %1832 = vmatpush2.bf16.msra.mxu0 %v1765
      %1833 = vmatprep.subr.bf16.mxu0 %v1764
      %1834 = vmatpush2.bf16.msra.mxu0 %v1763
      %1835 = vmatprep.subr.bf16.mxu0 %v1762
      %1836 = vmatpush2.bf16.msra.mxu0 %v1761
      %1837 = vmatprep.subr.bf16.mxu0 %v1760
      %1838 = vmatpush2.bf16.msra.mxu0 %v1759
      %1839 = vmatprep.mubr.bf16.mxu0 %v1584
      %1840 = vmatmul.mubr.bf16.gmra.mxu0 %v1583
      %v1841 = vpop.f32.mrf.mxu0
      %v1842 = vadd.f32 0.0, %v1841
      %v1843 = vpop.f32.mrf.mxu0
      %v1844 = vadd.f32 0.0, %v1843
      %v1845 = vpop.f32.mrf.mxu0
      %v1846 = vadd.f32 0.0, %v1845
      %v1847 = vpop.f32.mrf.mxu0
      %v1848 = vadd.f32 0.0, %v1847
      %1849 = vmatprep.mubr.bf16.mxu0 %v1586
      %1850 = vmatmul.mubr.bf16.gmra.mxu0 %v1585
      %v1851 = vpop.f32.mrf.mxu0
      %v1852 = vadd.f32 0.0, %v1851
      %v1853 = vpop.f32.mrf.mxu0
      %v1854 = vadd.f32 0.0, %v1853
      %v1855 = vpop.f32.mrf.mxu0
      %v1856 = vadd.f32 0.0, %v1855
      %v1857 = vpop.f32.mrf.mxu0
      %v1858 = vadd.f32 0.0, %v1857
      %1859 = vmatprep.mubr.bf16.mxu0 %v1588
      %1860 = vmatmul.mubr.bf16.gmra.mxu0 %v1587
      %v1861 = vpop.f32.mrf.mxu0
      %v1862 = vadd.f32 0.0, %v1861
      %v1863 = vpop.f32.mrf.mxu0
      %v1864 = vadd.f32 0.0, %v1863
      %v1865 = vpop.f32.mrf.mxu0
      %v1866 = vadd.f32 0.0, %v1865
      %v1867 = vpop.f32.mrf.mxu0
      %v1868 = vadd.f32 0.0, %v1867
      %1869 = vmatprep.mubr.bf16.mxu0 %v1590
      %1870 = vmatmul.mubr.bf16.gmra.mxu0 %v1589
      %v1871 = vpop.f32.mrf.mxu0
      %v1872 = vadd.f32 0.0, %v1871
      %v1873 = vpop.f32.mrf.mxu0
      %v1874 = vadd.f32 0.0, %v1873
      %v1875 = vpop.f32.mrf.mxu0
      %v1876 = vadd.f32 0.0, %v1875
      %v1877 = vpop.f32.mrf.mxu0
      %v1878 = vadd.f32 0.0, %v1877
      %1879 = vmatprep.mubr.bf16.mxu0 %v1592
      %1880 = vmatmul.mubr.bf16.gmra.mxu0 %v1591
      %v1881 = vpop.f32.mrf.mxu0
      %v1882 = vadd.f32 0.0, %v1881
      %v1883 = vpop.f32.mrf.mxu0
      %v1884 = vadd.f32 0.0, %v1883
      %v1885 = vpop.f32.mrf.mxu0
      %v1886 = vadd.f32 0.0, %v1885
      %v1887 = vpop.f32.mrf.mxu0
      %v1888 = vadd.f32 0.0, %v1887
      %1889 = vmatprep.mubr.bf16.mxu0 %v1594
      %1890 = vmatmul.mubr.bf16.gmra.mxu0 %v1593
      %v1891 = vpop.f32.mrf.mxu0
      %v1892 = vadd.f32 0.0, %v1891
      %v1893 = vpop.f32.mrf.mxu0
      %v1894 = vadd.f32 0.0, %v1893
      %v1895 = vpop.f32.mrf.mxu0
      %v1896 = vadd.f32 0.0, %v1895
      %v1897 = vpop.f32.mrf.mxu0
      %v1898 = vadd.f32 0.0, %v1897
      %1899 = vmatprep.mubr.bf16.mxu0 %v1596
      %1900 = vmatmul.mubr.bf16.gmra.mxu0 %v1595
      %v1901 = vpop.f32.mrf.mxu0
      %v1902 = vadd.f32 0.0, %v1901
      %v1903 = vpop.f32.mrf.mxu0
      %v1904 = vadd.f32 0.0, %v1903
      %v1905 = vpop.f32.mrf.mxu0
      %v1906 = vadd.f32 0.0, %v1905
      %v1907 = vpop.f32.mrf.mxu0
      %v1908 = vadd.f32 0.0, %v1907
      %1909 = vmatprep.mubr.bf16.mxu0 %v1598
      %1910 = vmatmul.mubr.bf16.gmra.mxu0 %v1597
      %v1911 = vpop.f32.mrf.mxu0
      %v1912 = vadd.f32 0.0, %v1911
      %v1913 = vpop.f32.mrf.mxu0
      %v1914 = vadd.f32 0.0, %v1913
      %v1915 = vpop.f32.mrf.mxu0
      %v1916 = vadd.f32 0.0, %v1915
      %v1917 = vpop.f32.mrf.mxu0
      %v1918 = vadd.f32 0.0, %v1917
      %1919 = vmatprep.mubr.bf16.mxu0 %v1600
      %1920 = vmatmul.mubr.bf16.gmra.mxu0 %v1599
      %v1921 = vpop.f32.mrf.mxu0
      %v1922 = vadd.f32 0.0, %v1921
      %v1923 = vpop.f32.mrf.mxu0
      %v1924 = vadd.f32 0.0, %v1923
      %v1925 = vpop.f32.mrf.mxu0
      %v1926 = vadd.f32 0.0, %v1925
      %v1927 = vpop.f32.mrf.mxu0
      %v1928 = vadd.f32 0.0, %v1927
      %1929 = vmatprep.mubr.bf16.mxu0 %v1602
      %1930 = vmatmul.mubr.bf16.gmra.mxu0 %v1601
      %v1931 = vpop.f32.mrf.mxu0
      %v1932 = vadd.f32 0.0, %v1931
      %v1933 = vpop.f32.mrf.mxu0
      %v1934 = vadd.f32 0.0, %v1933
      %v1935 = vpop.f32.mrf.mxu0
      %v1936 = vadd.f32 0.0, %v1935
      %v1937 = vpop.f32.mrf.mxu0
      %v1938 = vadd.f32 0.0, %v1937
      %1939 = vmatprep.mubr.bf16.mxu0 %v1604
      %1940 = vmatmul.mubr.bf16.gmra.mxu0 %v1603
      %v1941 = vpop.f32.mrf.mxu0
      %v1942 = vadd.f32 0.0, %v1941
      %v1943 = vpop.f32.mrf.mxu0
      %v1944 = vadd.f32 0.0, %v1943
      %v1945 = vpop.f32.mrf.mxu0
      %v1946 = vadd.f32 0.0, %v1945
      %v1947 = vpop.f32.mrf.mxu0
      %v1948 = vadd.f32 0.0, %v1947
      %1949 = vmatprep.mubr.bf16.mxu0 %v1606
      %1950 = vmatmul.mubr.bf16.gmra.mxu0 %v1605
      %v1951 = vpop.f32.mrf.mxu0
      %v1952 = vadd.f32 0.0, %v1951
      %v1953 = vpop.f32.mrf.mxu0
      %v1954 = vadd.f32 0.0, %v1953
      %v1955 = vpop.f32.mrf.mxu0
      %v1956 = vadd.f32 0.0, %v1955
      %v1957 = vpop.f32.mrf.mxu0
      %v1958 = vadd.f32 0.0, %v1957
      %1959 = vmatprep.mubr.bf16.mxu0 %v1608
      %1960 = vmatmul.mubr.bf16.gmra.mxu0 %v1607
      %v1961 = vpop.f32.mrf.mxu0
      %v1962 = vadd.f32 0.0, %v1961
      %v1963 = vpop.f32.mrf.mxu0
      %v1964 = vadd.f32 0.0, %v1963
      %v1965 = vpop.f32.mrf.mxu0
      %v1966 = vadd.f32 0.0, %v1965
      %v1967 = vpop.f32.mrf.mxu0
      %v1968 = vadd.f32 0.0, %v1967
      %1969 = vmatprep.mubr.bf16.mxu0 %v1610
      %1970 = vmatmul.mubr.bf16.gmra.mxu0 %v1609
      %v1971 = vpop.f32.mrf.mxu0
      %v1972 = vadd.f32 0.0, %v1971
      %v1973 = vpop.f32.mrf.mxu0
      %v1974 = vadd.f32 0.0, %v1973
      %v1975 = vpop.f32.mrf.mxu0
      %v1976 = vadd.f32 0.0, %v1975
      %v1977 = vpop.f32.mrf.mxu0
      %v1978 = vadd.f32 0.0, %v1977
      %1979 = vmatprep.mubr.bf16.mxu0 %v1612
      %1980 = vmatmul.mubr.bf16.gmra.mxu0 %v1611
      %v1981 = vpop.f32.mrf.mxu0
      %v1982 = vadd.f32 0.0, %v1981
      %v1983 = vpop.f32.mrf.mxu0
      %v1984 = vadd.f32 0.0, %v1983
      %v1985 = vpop.f32.mrf.mxu0
      %v1986 = vadd.f32 0.0, %v1985
      %v1987 = vpop.f32.mrf.mxu0
      %v1988 = vadd.f32 0.0, %v1987
      %1989 = vmatprep.mubr.bf16.mxu0 %v1614
      %1990 = vmatmul.mubr.bf16.gmra.mxu0 %v1613
      %v1991 = vpop.f32.mrf.mxu0
      %v1992 = vadd.f32 0.0, %v1991
      %v1993 = vpop.f32.mrf.mxu0
      %v1994 = vadd.f32 0.0, %v1993
      %v1995 = vpop.f32.mrf.mxu0
      %v1996 = vadd.f32 0.0, %v1995
      %v1997 = vpop.f32.mrf.mxu0
      %v1998 = vadd.f32 0.0, %v1997
      %1999 = vdwg.mxu0
      %v2000 = vadd.f32 %v1258, %v1842
      %v2001 = vadd.f32 %v1260, %v1844
      %v2002 = vadd.f32 %v1262, %v1846
      %v2003 = vadd.f32 %v1264, %v1848
      %v2004 = vadd.f32 %v1268, %v1852
      %v2005 = vadd.f32 %v1270, %v1854
      %v2006 = vadd.f32 %v1272, %v1856
      %v2007 = vadd.f32 %v1274, %v1858
      %v2008 = vadd.f32 %v1278, %v1862
      %v2009 = vadd.f32 %v1280, %v1864
      %v2010 = vadd.f32 %v1282, %v1866
      %v2011 = vadd.f32 %v1284, %v1868
      %v2012 = vadd.f32 %v1288, %v1872
      %v2013 = vadd.f32 %v1290, %v1874
      %v2014 = vadd.f32 %v1292, %v1876
      %v2015 = vadd.f32 %v1294, %v1878
      %v2016 = vadd.f32 %v1298, %v1882
      %v2017 = vadd.f32 %v1300, %v1884
      %v2018 = vadd.f32 %v1302, %v1886
      %v2019 = vadd.f32 %v1304, %v1888
      %v2020 = vadd.f32 %v1308, %v1892
      %v2021 = vadd.f32 %v1310, %v1894
      %v2022 = vadd.f32 %v1312, %v1896
      %v2023 = vadd.f32 %v1314, %v1898
      %v2024 = vadd.f32 %v1318, %v1902
      %v2025 = vadd.f32 %v1320, %v1904
      %v2026 = vadd.f32 %v1322, %v1906
      %v2027 = vadd.f32 %v1324, %v1908
      %v2028 = vadd.f32 %v1328, %v1912
      %v2029 = vadd.f32 %v1330, %v1914
      %v2030 = vadd.f32 %v1332, %v1916
      %v2031 = vadd.f32 %v1334, %v1918
      %v2032 = vadd.f32 %v1338, %v1922
      %v2033 = vadd.f32 %v1340, %v1924
      %v2034 = vadd.f32 %v1342, %v1926
      %v2035 = vadd.f32 %v1344, %v1928
      %v2036 = vadd.f32 %v1348, %v1932
      %v2037 = vadd.f32 %v1350, %v1934
      %v2038 = vadd.f32 %v1352, %v1936
      %v2039 = vadd.f32 %v1354, %v1938
      %v2040 = vadd.f32 %v1358, %v1942
      %v2041 = vadd.f32 %v1360, %v1944
      %v2042 = vadd.f32 %v1362, %v1946
      %v2043 = vadd.f32 %v1364, %v1948
      %v2044 = vadd.f32 %v1368, %v1952
      %v2045 = vadd.f32 %v1370, %v1954
      %v2046 = vadd.f32 %v1372, %v1956
      %v2047 = vadd.f32 %v1374, %v1958
      %v2048 = vadd.f32 %v1378, %v1962
      %v2049 = vadd.f32 %v1380, %v1964
      %v2050 = vadd.f32 %v1382, %v1966
      %v2051 = vadd.f32 %v1384, %v1968
      %v2052 = vadd.f32 %v1388, %v1972
      %v2053 = vadd.f32 %v1390, %v1974
      %v2054 = vadd.f32 %v1392, %v1976
      %v2055 = vadd.f32 %v1394, %v1978
      %v2056 = vadd.f32 %v1398, %v1982
      %v2057 = vadd.f32 %v1400, %v1984
      %v2058 = vadd.f32 %v1402, %v1986
      %v2059 = vadd.f32 %v1404, %v1988
      %v2060 = vadd.f32 %v1408, %v1992
      %v2061 = vadd.f32 %v1410, %v1994
      %v2062 = vadd.f32 %v1412, %v1996
      %v2063 = vadd.f32 %v1414, %v1998
      %v2064 = vld [vmem:[%s2] sm:$0x3]
      %v2066 = vlaneseq
      %v2067 = vshrl.u32 %v2066, 7
      %v2068 = vsub.s32 0, %v2067
      %v2069 = vrot.slane %v2064, %v2068
      %v2070 = vlaneseq
      %v2071 = vshrl.u32 %v2070, 7
      %v2072 = vsub.s32 1, %v2071
      %v2073 = vrot.slane %v2064, %v2072
      %v2076 = vadd.f32 %v2000, %v2069
      %v2077 = vadd.f32 %v2001, %v2073
      %v2078 = vadd.f32 %v2002, %v2069
      %v2079 = vadd.f32 %v2003, %v2073
      %v2080 = vadd.f32 %v2004, %v2069
      %v2081 = vadd.f32 %v2005, %v2073
      %v2082 = vadd.f32 %v2006, %v2069
      %v2083 = vadd.f32 %v2007, %v2073
      %v2084 = vadd.f32 %v2008, %v2069
      %v2085 = vadd.f32 %v2009, %v2073
      %v2086 = vadd.f32 %v2010, %v2069
      %v2087 = vadd.f32 %v2011, %v2073
      %v2088 = vadd.f32 %v2012, %v2069
      %v2089 = vadd.f32 %v2013, %v2073
      %v2090 = vadd.f32 %v2014, %v2069
      %v2091 = vadd.f32 %v2015, %v2073
      %v2092 = vadd.f32 %v2016, %v2069
      %v2093 = vadd.f32 %v2017, %v2073
      %v2094 = vadd.f32 %v2018, %v2069
      %v2095 = vadd.f32 %v2019, %v2073
      %v2096 = vadd.f32 %v2020, %v2069
      %v2097 = vadd.f32 %v2021, %v2073
      %v2098 = vadd.f32 %v2022, %v2069
      %v2099 = vadd.f32 %v2023, %v2073
      %v2100 = vadd.f32 %v2024, %v2069
      %v2101 = vadd.f32 %v2025, %v2073
      %v2102 = vadd.f32 %v2026, %v2069
      %v2103 = vadd.f32 %v2027, %v2073
      %v2104 = vadd.f32 %v2028, %v2069
      %v2105 = vadd.f32 %v2029, %v2073
      %v2106 = vadd.f32 %v2030, %v2069
      %v2107 = vadd.f32 %v2031, %v2073
      %v2108 = vadd.f32 %v2032, %v2069
      %v2109 = vadd.f32 %v2033, %v2073
      %v2110 = vadd.f32 %v2034, %v2069
      %v2111 = vadd.f32 %v2035, %v2073
      %v2112 = vadd.f32 %v2036, %v2069
      %v2113 = vadd.f32 %v2037, %v2073
      %v2114 = vadd.f32 %v2038, %v2069
      %v2115 = vadd.f32 %v2039, %v2073
      %v2116 = vadd.f32 %v2040, %v2069
      %v2117 = vadd.f32 %v2041, %v2073
      %v2118 = vadd.f32 %v2042, %v2069
      %v2119 = vadd.f32 %v2043, %v2073
      %v2120 = vadd.f32 %v2044, %v2069
      %v2121 = vadd.f32 %v2045, %v2073
      %v2122 = vadd.f32 %v2046, %v2069
      %v2123 = vadd.f32 %v2047, %v2073
      %v2124 = vadd.f32 %v2048, %v2069
      %v2125 = vadd.f32 %v2049, %v2073
      %v2126 = vadd.f32 %v2050, %v2069
      %v2127 = vadd.f32 %v2051, %v2073
      %v2128 = vadd.f32 %v2052, %v2069
      %v2129 = vadd.f32 %v2053, %v2073
      %v2130 = vadd.f32 %v2054, %v2069
      %v2131 = vadd.f32 %v2055, %v2073
      %v2132 = vadd.f32 %v2056, %v2069
      %v2133 = vadd.f32 %v2057, %v2073
      %v2134 = vadd.f32 %v2058, %v2069
      %v2135 = vadd.f32 %v2059, %v2073
      %v2136 = vadd.f32 %v2060, %v2069
      %v2137 = vadd.f32 %v2061, %v2073
      %v2138 = vadd.f32 %v2062, %v2069
      %v2139 = vadd.f32 %v2063, %v2073
      %v2140 = vmax.f32 %v2076, 0.0
      %v2141 = vmax.f32 %v2077, 0.0
      %v2142 = vmax.f32 %v2078, 0.0
      %v2143 = vmax.f32 %v2079, 0.0
      %v2144 = vmax.f32 %v2080, 0.0
      %v2145 = vmax.f32 %v2081, 0.0
      %v2146 = vmax.f32 %v2082, 0.0
      %v2147 = vmax.f32 %v2083, 0.0
      %v2148 = vmax.f32 %v2084, 0.0
      %v2149 = vmax.f32 %v2085, 0.0
      %v2150 = vmax.f32 %v2086, 0.0
      %v2151 = vmax.f32 %v2087, 0.0
      %v2152 = vmax.f32 %v2088, 0.0
      %v2153 = vmax.f32 %v2089, 0.0
      %v2154 = vmax.f32 %v2090, 0.0
      %v2155 = vmax.f32 %v2091, 0.0
      %v2156 = vmax.f32 %v2092, 0.0
      %v2157 = vmax.f32 %v2093, 0.0
      %v2158 = vmax.f32 %v2094, 0.0
      %v2159 = vmax.f32 %v2095, 0.0
      %v2160 = vmax.f32 %v2096, 0.0
      %v2161 = vmax.f32 %v2097, 0.0
      %v2162 = vmax.f32 %v2098, 0.0
      %v2163 = vmax.f32 %v2099, 0.0
      %v2164 = vmax.f32 %v2100, 0.0
      %v2165 = vmax.f32 %v2101, 0.0
      %v2166 = vmax.f32 %v2102, 0.0
      %v2167 = vmax.f32 %v2103, 0.0
      %v2168 = vmax.f32 %v2104, 0.0
      %v2169 = vmax.f32 %v2105, 0.0
      %v2170 = vmax.f32 %v2106, 0.0
      %v2171 = vmax.f32 %v2107, 0.0
      %v2172 = vmax.f32 %v2108, 0.0
      %v2173 = vmax.f32 %v2109, 0.0
      %v2174 = vmax.f32 %v2110, 0.0
      %v2175 = vmax.f32 %v2111, 0.0
      %v2176 = vmax.f32 %v2112, 0.0
      %v2177 = vmax.f32 %v2113, 0.0
      %v2178 = vmax.f32 %v2114, 0.0
      %v2179 = vmax.f32 %v2115, 0.0
      %v2180 = vmax.f32 %v2116, 0.0
      %v2181 = vmax.f32 %v2117, 0.0
      %v2182 = vmax.f32 %v2118, 0.0
      %v2183 = vmax.f32 %v2119, 0.0
      %v2184 = vmax.f32 %v2120, 0.0
      %v2185 = vmax.f32 %v2121, 0.0
      %v2186 = vmax.f32 %v2122, 0.0
      %v2187 = vmax.f32 %v2123, 0.0
      %v2188 = vmax.f32 %v2124, 0.0
      %v2189 = vmax.f32 %v2125, 0.0
      %v2190 = vmax.f32 %v2126, 0.0
      %v2191 = vmax.f32 %v2127, 0.0
      %v2192 = vmax.f32 %v2128, 0.0
      %v2193 = vmax.f32 %v2129, 0.0
      %v2194 = vmax.f32 %v2130, 0.0
      %v2195 = vmax.f32 %v2131, 0.0
      %v2196 = vmax.f32 %v2132, 0.0
      %v2197 = vmax.f32 %v2133, 0.0
      %v2198 = vmax.f32 %v2134, 0.0
      %v2199 = vmax.f32 %v2135, 0.0
      %v2200 = vmax.f32 %v2136, 0.0
      %v2201 = vmax.f32 %v2137, 0.0
      %v2202 = vmax.f32 %v2138, 0.0
      %v2203 = vmax.f32 %v2139, 0.0
      %v2204 = vpack.c.bf16 %v2142, %v2140
      %v2205 = vpack.c.bf16 %v2143, %v2141
      %v2206 = vpack.c.bf16 %v2146, %v2144
      %v2207 = vpack.c.bf16 %v2147, %v2145
      %v2208 = vpack.c.bf16 %v2150, %v2148
      %v2209 = vpack.c.bf16 %v2151, %v2149
      %v2210 = vpack.c.bf16 %v2154, %v2152
      %v2211 = vpack.c.bf16 %v2155, %v2153
      %v2212 = vpack.c.bf16 %v2158, %v2156
      %v2213 = vpack.c.bf16 %v2159, %v2157
      %v2214 = vpack.c.bf16 %v2162, %v2160
      %v2215 = vpack.c.bf16 %v2163, %v2161
      %v2216 = vpack.c.bf16 %v2166, %v2164
      %v2217 = vpack.c.bf16 %v2167, %v2165
      %v2218 = vpack.c.bf16 %v2170, %v2168
      %v2219 = vpack.c.bf16 %v2171, %v2169
      %v2220 = vpack.c.bf16 %v2174, %v2172
      %v2221 = vpack.c.bf16 %v2175, %v2173
      %v2222 = vpack.c.bf16 %v2178, %v2176
      %v2223 = vpack.c.bf16 %v2179, %v2177
      %v2224 = vpack.c.bf16 %v2182, %v2180
      %v2225 = vpack.c.bf16 %v2183, %v2181
      %v2226 = vpack.c.bf16 %v2186, %v2184
      %v2227 = vpack.c.bf16 %v2187, %v2185
      %v2228 = vpack.c.bf16 %v2190, %v2188
      %v2229 = vpack.c.bf16 %v2191, %v2189
      %v2230 = vpack.c.bf16 %v2194, %v2192
      %v2231 = vpack.c.bf16 %v2195, %v2193
      %v2232 = vpack.c.bf16 %v2198, %v2196
      %v2233 = vpack.c.bf16 %v2199, %v2197
      %v2234 = vpack.c.bf16 %v2202, %v2200
      %v2235 = vpack.c.bf16 %v2203, %v2201
      %v2236 = vld [vmem:[%s3] sm:$0xf]
      %v2237 = vld [vmem:[%s3 + $0x4] sm:$0xf]
      %v2238 = vld [vmem:[%s3 + $0x8] sm:$0xf]
      %v2239 = vld [vmem:[%s3 + $0xc] sm:$0xf]
      %v2240 = vld [vmem:[%s3 + $0x10] sm:$0xf]
      %v2241 = vld [vmem:[%s3 + $0x14] sm:$0xf]
      %v2242 = vld [vmem:[%s3 + $0x18] sm:$0xf]
      %v2243 = vld [vmem:[%s3 + $0x1c] sm:$0xf]
      %v2244 = vld [vmem:[%s3 + $0x20] sm:$0xf]
      %v2245 = vld [vmem:[%s3 + $0x24] sm:$0xf]
      %v2246 = vld [vmem:[%s3 + $0x28] sm:$0xf]
      %v2247 = vld [vmem:[%s3 + $0x2c] sm:$0xf]
      %v2248 = vld [vmem:[%s3 + $0x30] sm:$0xf]
      %v2249 = vld [vmem:[%s3 + $0x34] sm:$0xf]
      %v2250 = vld [vmem:[%s3 + $0x38] sm:$0xf]
      %v2251 = vld [vmem:[%s3 + $0x3c] sm:$0xf]
      %v2252 = vld [vmem:[%s3 + $0x40] sm:$0xf]
      %v2253 = vld [vmem:[%s3 + $0x44] sm:$0xf]
      %v2254 = vld [vmem:[%s3 + $0x48] sm:$0xf]
      %v2255 = vld [vmem:[%s3 + $0x4c] sm:$0xf]
      %v2256 = vld [vmem:[%s3 + $0x50] sm:$0xf]
      %v2257 = vld [vmem:[%s3 + $0x54] sm:$0xf]
      %v2258 = vld [vmem:[%s3 + $0x58] sm:$0xf]
      %v2259 = vld [vmem:[%s3 + $0x5c] sm:$0xf]
      %v2260 = vld [vmem:[%s3 + $0x60] sm:$0xf]
      %v2261 = vld [vmem:[%s3 + $0x64] sm:$0xf]
      %v2262 = vld [vmem:[%s3 + $0x68] sm:$0xf]
      %v2263 = vld [vmem:[%s3 + $0x6c] sm:$0xf]
      %v2264 = vld [vmem:[%s3 + $0x70] sm:$0xf]
      %v2265 = vld [vmem:[%s3 + $0x74] sm:$0xf]
      %v2266 = vld [vmem:[%s3 + $0x78] sm:$0xf]
      %v2267 = vld [vmem:[%s3 + $0x7c] sm:$0xf]
      %v2268 = vld [vmem:[%s4] sm:$0x1]
      %v2270 = vlaneseq
      %v2271 = vshrl.u32 %v2270, 7
      %v2272 = vsub.s32 0, %v2271
      %v2273 = vrot.slane %v2268, %v2272
      %v2307 = vunpack.c.l.b16 %v2236
      %v2308 = vunpack.c.l.b16 %v2237
      %v2309 = vunpack.c.l.b16 %v2238
      %v2310 = vunpack.c.l.b16 %v2239
      %v2311 = vunpack.c.l.b16 %v2240
      %v2312 = vunpack.c.l.b16 %v2241
      %v2313 = vunpack.c.l.b16 %v2242
      %v2314 = vunpack.c.l.b16 %v2243
      %v2315 = vunpack.c.l.b16 %v2244
      %v2316 = vunpack.c.l.b16 %v2245
      %v2317 = vunpack.c.l.b16 %v2246
      %v2318 = vunpack.c.l.b16 %v2247
      %v2319 = vunpack.c.l.b16 %v2248
      %v2320 = vunpack.c.l.b16 %v2249
      %v2321 = vunpack.c.l.b16 %v2250
      %v2322 = vunpack.c.l.b16 %v2251
      %v2323 = vunpack.c.l.b16 %v2252
      %v2324 = vunpack.c.l.b16 %v2253
      %v2325 = vunpack.c.l.b16 %v2254
      %v2326 = vunpack.c.l.b16 %v2255
      %v2327 = vunpack.c.l.b16 %v2256
      %v2328 = vunpack.c.l.b16 %v2257
      %v2329 = vunpack.c.l.b16 %v2258
      %v2330 = vunpack.c.l.b16 %v2259
      %v2331 = vunpack.c.l.b16 %v2260
      %v2332 = vunpack.c.l.b16 %v2261
      %v2333 = vunpack.c.l.b16 %v2262
      %v2334 = vunpack.c.l.b16 %v2263
      %v2335 = vunpack.c.l.b16 %v2264
      %v2336 = vunpack.c.l.b16 %v2265
      %v2337 = vunpack.c.l.b16 %v2266
      %v2338 = vunpack.c.l.b16 %v2267
      %v2339 = vpack.c.b16 %v2308, %v2307
      %v2340 = vpack.c.b16 %v2310, %v2309
      %v2341 = vpack.c.b16 %v2312, %v2311
      %v2342 = vpack.c.b16 %v2314, %v2313
      %v2343 = vpack.c.b16 %v2316, %v2315
      %v2344 = vpack.c.b16 %v2318, %v2317
      %v2345 = vpack.c.b16 %v2320, %v2319
      %v2346 = vpack.c.b16 %v2322, %v2321
      %v2347 = vpack.c.b16 %v2324, %v2323
      %v2348 = vpack.c.b16 %v2326, %v2325
      %v2349 = vpack.c.b16 %v2328, %v2327
      %v2350 = vpack.c.b16 %v2330, %v2329
      %v2351 = vpack.c.b16 %v2332, %v2331
      %v2352 = vpack.c.b16 %v2334, %v2333
      %v2353 = vpack.c.b16 %v2336, %v2335
      %v2354 = vpack.c.b16 %v2338, %v2337
      %2371 = vmatprep.subr.bf16.mxu0 0
      %2372 = vmatpush1.bf16.msra.mxu0 %v2346
      %2373 = vmatprep.subr.bf16.mxu0 0
      %2374 = vmatpush1.bf16.msra.mxu0 %v2345
      %2375 = vmatprep.subr.bf16.mxu0 0
      %2376 = vmatpush1.bf16.msra.mxu0 %v2344
      %2377 = vmatprep.subr.bf16.mxu0 0
      %2378 = vmatpush1.bf16.msra.mxu0 %v2343
      %2379 = vmatprep.subr.bf16.mxu0 0
      %2380 = vmatpush1.bf16.msra.mxu0 %v2342
      %2381 = vmatprep.subr.bf16.mxu0 0
      %2382 = vmatpush1.bf16.msra.mxu0 %v2341
      %2383 = vmatprep.subr.bf16.mxu0 0
      %2384 = vmatpush1.bf16.msra.mxu0 %v2340
      %2385 = vmatprep.subr.bf16.mxu0 0
      %2386 = vmatpush1.bf16.msra.mxu0 %v2339
      %2387 = vmatprep.subr.bf16.mxu0 0
      %2388 = vmatpush2.bf16.msra.mxu0 %v2354
      %2389 = vmatprep.subr.bf16.mxu0 0
      %2390 = vmatpush2.bf16.msra.mxu0 %v2353
      %2391 = vmatprep.subr.bf16.mxu0 0
      %2392 = vmatpush2.bf16.msra.mxu0 %v2352
      %2393 = vmatprep.subr.bf16.mxu0 0
      %2394 = vmatpush2.bf16.msra.mxu0 %v2351
      %2395 = vmatprep.subr.bf16.mxu0 0
      %2396 = vmatpush2.bf16.msra.mxu0 %v2350
      %2397 = vmatprep.subr.bf16.mxu0 0
      %2398 = vmatpush2.bf16.msra.mxu0 %v2349
      %2399 = vmatprep.subr.bf16.mxu0 0
      %2400 = vmatpush2.bf16.msra.mxu0 %v2348
      %2401 = vmatprep.subr.bf16.mxu0 0
      %2402 = vmatpush2.bf16.msra.mxu0 %v2347
      %2403 = vmatprep.mubr.bf16.mxu0 %v2205
      %2404 = vmatmul.mubr.bf16.gmra.mxu0 %v2204
      %v2405 = vpop.f32.mrf.mxu0
      %v2406 = vadd.f32 %v2273, %v2405
      %v2407 = vpop.f32.mrf.mxu0
      %v2408 = vpop.f32.mrf.mxu0
      %v2409 = vadd.f32 %v2273, %v2408
      %v2410 = vpop.f32.mrf.mxu0
      %2411 = vmatprep.mubr.bf16.mxu0 %v2207
      %2412 = vmatmul.mubr.bf16.gmra.mxu0 %v2206
      %v2413 = vpop.f32.mrf.mxu0
      %v2414 = vadd.f32 %v2273, %v2413
      %v2415 = vpop.f32.mrf.mxu0
      %v2416 = vpop.f32.mrf.mxu0
      %v2417 = vadd.f32 %v2273, %v2416
      %v2418 = vpop.f32.mrf.mxu0
      %2419 = vmatprep.mubr.bf16.mxu0 %v2209
      %2420 = vmatmul.mubr.bf16.gmra.mxu0 %v2208
      %v2421 = vpop.f32.mrf.mxu0
      %v2422 = vadd.f32 %v2273, %v2421
      %v2423 = vpop.f32.mrf.mxu0
      %v2424 = vpop.f32.mrf.mxu0
      %v2425 = vadd.f32 %v2273, %v2424
      %v2426 = vpop.f32.mrf.mxu0
      %2427 = vmatprep.mubr.bf16.mxu0 %v2211
      %2428 = vmatmul.mubr.bf16.gmra.mxu0 %v2210
      %v2429 = vpop.f32.mrf.mxu0
      %v2430 = vadd.f32 %v2273, %v2429
      %v2431 = vpop.f32.mrf.mxu0
      %v2432 = vpop.f32.mrf.mxu0
      %v2433 = vadd.f32 %v2273, %v2432
      %v2434 = vpop.f32.mrf.mxu0
      %2435 = vmatprep.mubr.bf16.mxu0 %v2213
      %2436 = vmatmul.mubr.bf16.gmra.mxu0 %v2212
      %v2437 = vpop.f32.mrf.mxu0
      %v2438 = vadd.f32 %v2273, %v2437
      %v2439 = vpop.f32.mrf.mxu0
      %v2440 = vpop.f32.mrf.mxu0
      %v2441 = vadd.f32 %v2273, %v2440
      %v2442 = vpop.f32.mrf.mxu0
      %2443 = vmatprep.mubr.bf16.mxu0 %v2215
      %2444 = vmatmul.mubr.bf16.gmra.mxu0 %v2214
      %v2445 = vpop.f32.mrf.mxu0
      %v2446 = vadd.f32 %v2273, %v2445
      %v2447 = vpop.f32.mrf.mxu0
      %v2448 = vpop.f32.mrf.mxu0
      %v2449 = vadd.f32 %v2273, %v2448
      %v2450 = vpop.f32.mrf.mxu0
      %2451 = vmatprep.mubr.bf16.mxu0 %v2217
      %2452 = vmatmul.mubr.bf16.gmra.mxu0 %v2216
      %v2453 = vpop.f32.mrf.mxu0
      %v2454 = vadd.f32 %v2273, %v2453
      %v2455 = vpop.f32.mrf.mxu0
      %v2456 = vpop.f32.mrf.mxu0
      %v2457 = vadd.f32 %v2273, %v2456
      %v2458 = vpop.f32.mrf.mxu0
      %2459 = vmatprep.mubr.bf16.mxu0 %v2219
      %2460 = vmatmul.mubr.bf16.gmra.mxu0 %v2218
      %v2461 = vpop.f32.mrf.mxu0
      %v2462 = vadd.f32 %v2273, %v2461
      %v2463 = vpop.f32.mrf.mxu0
      %v2464 = vpop.f32.mrf.mxu0
      %v2465 = vadd.f32 %v2273, %v2464
      %v2466 = vpop.f32.mrf.mxu0
      %2467 = vmatprep.mubr.bf16.mxu0 %v2221
      %2468 = vmatmul.mubr.bf16.gmra.mxu0 %v2220
      %v2469 = vpop.f32.mrf.mxu0
      %v2470 = vadd.f32 %v2273, %v2469
      %v2471 = vpop.f32.mrf.mxu0
      %v2472 = vpop.f32.mrf.mxu0
      %v2473 = vadd.f32 %v2273, %v2472
      %v2474 = vpop.f32.mrf.mxu0
      %2475 = vmatprep.mubr.bf16.mxu0 %v2223
      %2476 = vmatmul.mubr.bf16.gmra.mxu0 %v2222
      %v2477 = vpop.f32.mrf.mxu0
      %v2478 = vadd.f32 %v2273, %v2477
      %v2479 = vpop.f32.mrf.mxu0
      %v2480 = vpop.f32.mrf.mxu0
      %v2481 = vadd.f32 %v2273, %v2480
      %v2482 = vpop.f32.mrf.mxu0
      %2483 = vmatprep.mubr.bf16.mxu0 %v2225
      %2484 = vmatmul.mubr.bf16.gmra.mxu0 %v2224
      %v2485 = vpop.f32.mrf.mxu0
      %v2486 = vadd.f32 %v2273, %v2485
      %v2487 = vpop.f32.mrf.mxu0
      %v2488 = vpop.f32.mrf.mxu0
      %v2489 = vadd.f32 %v2273, %v2488
      %v2490 = vpop.f32.mrf.mxu0
      %2491 = vmatprep.mubr.bf16.mxu0 %v2227
      %2492 = vmatmul.mubr.bf16.gmra.mxu0 %v2226
      %v2493 = vpop.f32.mrf.mxu0
      %v2494 = vadd.f32 %v2273, %v2493
      %v2495 = vpop.f32.mrf.mxu0
      %v2496 = vpop.f32.mrf.mxu0
      %v2497 = vadd.f32 %v2273, %v2496
      %v2498 = vpop.f32.mrf.mxu0
      %2499 = vmatprep.mubr.bf16.mxu0 %v2229
      %2500 = vmatmul.mubr.bf16.gmra.mxu0 %v2228
      %v2501 = vpop.f32.mrf.mxu0
      %v2502 = vadd.f32 %v2273, %v2501
      %v2503 = vpop.f32.mrf.mxu0
      %v2504 = vpop.f32.mrf.mxu0
      %v2505 = vadd.f32 %v2273, %v2504
      %v2506 = vpop.f32.mrf.mxu0
      %2507 = vmatprep.mubr.bf16.mxu0 %v2231
      %2508 = vmatmul.mubr.bf16.gmra.mxu0 %v2230
      %v2509 = vpop.f32.mrf.mxu0
      %v2510 = vadd.f32 %v2273, %v2509
      %v2511 = vpop.f32.mrf.mxu0
      %v2512 = vpop.f32.mrf.mxu0
      %v2513 = vadd.f32 %v2273, %v2512
      %v2514 = vpop.f32.mrf.mxu0
      %2515 = vmatprep.mubr.bf16.mxu0 %v2233
      %2516 = vmatmul.mubr.bf16.gmra.mxu0 %v2232
      %v2517 = vpop.f32.mrf.mxu0
      %v2518 = vadd.f32 %v2273, %v2517
      %v2519 = vpop.f32.mrf.mxu0
      %v2520 = vpop.f32.mrf.mxu0
      %v2521 = vadd.f32 %v2273, %v2520
      %v2522 = vpop.f32.mrf.mxu0
      %2523 = vmatprep.mubr.bf16.mxu0 %v2235
      %2524 = vmatmul.mubr.bf16.gmra.mxu0 %v2234
      %v2525 = vpop.f32.mrf.mxu0
      %v2526 = vadd.f32 %v2273, %v2525
      %v2527 = vpop.f32.mrf.mxu0
      %v2528 = vpop.f32.mrf.mxu0
      %v2529 = vadd.f32 %v2273, %v2528
      %v2530 = vpop.f32.mrf.mxu0
      %2531 = vdwg.mxu0
      %v2532 = vlaneseq
      %v2533 = vand.u32 %v2532, 127
      %vm2534 = vcmp.lt.s32.totalorder %v2533, 80
      %v2535 = vxor.u32 %v2406, 2147483648
      %v2536 = vxor.u32 %v2409, 2147483648
      %v2537 = vxor.u32 %v2414, 2147483648
      %v2538 = vxor.u32 %v2417, 2147483648
      %v2539 = vxor.u32 %v2422, 2147483648
      %v2540 = vxor.u32 %v2425, 2147483648
      %v2541 = vxor.u32 %v2430, 2147483648
      %v2542 = vxor.u32 %v2433, 2147483648
      %v2543 = vxor.u32 %v2438, 2147483648
      %v2544 = vxor.u32 %v2441, 2147483648
      %v2545 = vxor.u32 %v2446, 2147483648
      %v2546 = vxor.u32 %v2449, 2147483648
      %v2547 = vxor.u32 %v2454, 2147483648
      %v2548 = vxor.u32 %v2457, 2147483648
      %v2549 = vxor.u32 %v2462, 2147483648
      %v2550 = vxor.u32 %v2465, 2147483648
      %v2551 = vxor.u32 %v2470, 2147483648
      %v2552 = vxor.u32 %v2473, 2147483648
      %v2553 = vxor.u32 %v2478, 2147483648
      %v2554 = vxor.u32 %v2481, 2147483648
      %v2555 = vxor.u32 %v2486, 2147483648
      %v2556 = vxor.u32 %v2489, 2147483648
      %v2557 = vxor.u32 %v2494, 2147483648
      %v2558 = vxor.u32 %v2497, 2147483648
      %v2559 = vxor.u32 %v2502, 2147483648
      %v2560 = vxor.u32 %v2505, 2147483648
      %v2561 = vxor.u32 %v2510, 2147483648
      %v2562 = vxor.u32 %v2513, 2147483648
      %v2563 = vxor.u32 %v2518, 2147483648
      %v2564 = vxor.u32 %v2521, 2147483648
      %v2565 = vxor.u32 %v2526, 2147483648
      %v2566 = vxor.u32 %v2529, 2147483648
      %v2567 = vmul.f32 %v2535, 1.442695
      %v2568 = vpow.pop %v2567
      %v2569 = vmul.f32 %v2536, 1.442695
      %v2570 = vpow.pop %v2569
      %v2571 = vmul.f32 %v2537, 1.442695
      %v2572 = vpow.pop %v2571
      %v2573 = vmul.f32 %v2538, 1.442695
      %v2574 = vpow.pop %v2573
      %v2575 = vmul.f32 %v2539, 1.442695
      %v2576 = vpow.pop %v2575
      %v2577 = vmul.f32 %v2540, 1.442695
      %v2578 = vpow.pop %v2577
      %v2579 = vmul.f32 %v2541, 1.442695
      %v2580 = vpow.pop %v2579
      %v2581 = vmul.f32 %v2542, 1.442695
      %v2582 = vpow.pop %v2581
      %v2583 = vmul.f32 %v2543, 1.442695
      %v2584 = vpow.pop %v2583
      %v2585 = vmul.f32 %v2544, 1.442695
      %v2586 = vpow.pop %v2585
      %v2587 = vmul.f32 %v2545, 1.442695
      %v2588 = vpow.pop %v2587
      %v2589 = vmul.f32 %v2546, 1.442695
      %v2590 = vpow.pop %v2589
      %v2591 = vmul.f32 %v2547, 1.442695
      %v2592 = vpow.pop %v2591
      %v2593 = vmul.f32 %v2548, 1.442695
      %v2594 = vpow.pop %v2593
      %v2595 = vmul.f32 %v2549, 1.442695
      %v2596 = vpow.pop %v2595
      %v2597 = vmul.f32 %v2550, 1.442695
      %v2598 = vpow.pop %v2597
      %v2599 = vmul.f32 %v2551, 1.442695
      %v2600 = vpow.pop %v2599
      %v2601 = vmul.f32 %v2552, 1.442695
      %v2602 = vpow.pop %v2601
      %v2603 = vmul.f32 %v2553, 1.442695
      %v2604 = vpow.pop %v2603
      %v2605 = vmul.f32 %v2554, 1.442695
      %v2606 = vpow.pop %v2605
      %v2607 = vmul.f32 %v2555, 1.442695
      %v2608 = vpow.pop %v2607
      %v2609 = vmul.f32 %v2556, 1.442695
      %v2610 = vpow.pop %v2609
      %v2611 = vmul.f32 %v2557, 1.442695
      %v2612 = vpow.pop %v2611
      %v2613 = vmul.f32 %v2558, 1.442695
      %v2614 = vpow.pop %v2613
      %v2615 = vmul.f32 %v2559, 1.442695
      %v2616 = vpow.pop %v2615
      %v2617 = vmul.f32 %v2560, 1.442695
      %v2618 = vpow.pop %v2617
      %v2619 = vmul.f32 %v2561, 1.442695
      %v2620 = vpow.pop %v2619
      %v2621 = vmul.f32 %v2562, 1.442695
      %v2622 = vpow.pop %v2621
      %v2623 = vmul.f32 %v2563, 1.442695
      %v2624 = vpow.pop %v2623
      %v2625 = vmul.f32 %v2564, 1.442695
      %v2626 = vpow.pop %v2625
      %v2627 = vmul.f32 %v2565, 1.442695
      %v2628 = vpow.pop %v2627
      %v2629 = vmul.f32 %v2566, 1.442695
      %v2630 = vpow.pop %v2629
      %v2631 = vadd.f32 %v2568, 1.0
      %v2632 = vadd.f32 %v2570, 1.0
      %v2633 = vadd.f32 %v2572, 1.0
      %v2634 = vadd.f32 %v2574, 1.0
      %v2635 = vadd.f32 %v2576, 1.0
      %v2636 = vadd.f32 %v2578, 1.0
      %v2637 = vadd.f32 %v2580, 1.0
      %v2638 = vadd.f32 %v2582, 1.0
      %v2639 = vadd.f32 %v2584, 1.0
      %v2640 = vadd.f32 %v2586, 1.0
      %v2641 = vadd.f32 %v2588, 1.0
      %v2642 = vadd.f32 %v2590, 1.0
      %v2643 = vadd.f32 %v2592, 1.0
      %v2644 = vadd.f32 %v2594, 1.0
      %v2645 = vadd.f32 %v2596, 1.0
      %v2646 = vadd.f32 %v2598, 1.0
      %v2647 = vadd.f32 %v2600, 1.0
      %v2648 = vadd.f32 %v2602, 1.0
      %v2649 = vadd.f32 %v2604, 1.0
      %v2650 = vadd.f32 %v2606, 1.0
      %v2651 = vadd.f32 %v2608, 1.0
      %v2652 = vadd.f32 %v2610, 1.0
      %v2653 = vadd.f32 %v2612, 1.0
      %v2654 = vadd.f32 %v2614, 1.0
      %v2655 = vadd.f32 %v2616, 1.0
      %v2656 = vadd.f32 %v2618, 1.0
      %v2657 = vadd.f32 %v2620, 1.0
      %v2658 = vadd.f32 %v2622, 1.0
      %v2659 = vadd.f32 %v2624, 1.0
      %v2660 = vadd.f32 %v2626, 1.0
      %v2661 = vadd.f32 %v2628, 1.0
      %v2662 = vadd.f32 %v2630, 1.0
      %v2663 = vrcp.pop %v2631
      %v2664 = vmul.f32 1.0, %v2663
      %v2665 = vrcp.pop %v2632
      %v2666 = vmul.f32 1.0, %v2665
      %v2667 = vrcp.pop %v2633
      %v2668 = vmul.f32 1.0, %v2667
      %v2669 = vrcp.pop %v2634
      %v2670 = vmul.f32 1.0, %v2669
      %v2671 = vrcp.pop %v2635
      %v2672 = vmul.f32 1.0, %v2671
      %v2673 = vrcp.pop %v2636
      %v2674 = vmul.f32 1.0, %v2673
      %v2675 = vrcp.pop %v2637
      %v2676 = vmul.f32 1.0, %v2675
      %v2677 = vrcp.pop %v2638
      %v2678 = vmul.f32 1.0, %v2677
      %v2679 = vrcp.pop %v2639
      %v2680 = vmul.f32 1.0, %v2679
      %v2681 = vrcp.pop %v2640
      %v2682 = vmul.f32 1.0, %v2681
      %v2683 = vrcp.pop %v2641
      %v2684 = vmul.f32 1.0, %v2683
      %v2685 = vrcp.pop %v2642
      %v2686 = vmul.f32 1.0, %v2685
      %v2687 = vrcp.pop %v2643
      %v2688 = vmul.f32 1.0, %v2687
      %v2689 = vrcp.pop %v2644
      %v2690 = vmul.f32 1.0, %v2689
      %v2691 = vrcp.pop %v2645
      %v2692 = vmul.f32 1.0, %v2691
      %v2693 = vrcp.pop %v2646
      %v2694 = vmul.f32 1.0, %v2693
      %v2695 = vrcp.pop %v2647
      %v2696 = vmul.f32 1.0, %v2695
      %v2697 = vrcp.pop %v2648
      %v2698 = vmul.f32 1.0, %v2697
      %v2699 = vrcp.pop %v2649
      %v2700 = vmul.f32 1.0, %v2699
      %v2701 = vrcp.pop %v2650
      %v2702 = vmul.f32 1.0, %v2701
      %v2703 = vrcp.pop %v2651
      %v2704 = vmul.f32 1.0, %v2703
      %v2705 = vrcp.pop %v2652
      %v2706 = vmul.f32 1.0, %v2705
      %v2707 = vrcp.pop %v2653
      %v2708 = vmul.f32 1.0, %v2707
      %v2709 = vrcp.pop %v2654
      %v2710 = vmul.f32 1.0, %v2709
      %v2711 = vrcp.pop %v2655
      %v2712 = vmul.f32 1.0, %v2711
      %v2713 = vrcp.pop %v2656
      %v2714 = vmul.f32 1.0, %v2713
      %v2715 = vrcp.pop %v2657
      %v2716 = vmul.f32 1.0, %v2715
      %v2717 = vrcp.pop %v2658
      %v2718 = vmul.f32 1.0, %v2717
      %v2719 = vrcp.pop %v2659
      %v2720 = vmul.f32 1.0, %v2719
      %v2721 = vrcp.pop %v2660
      %v2722 = vmul.f32 1.0, %v2721
      %v2723 = vrcp.pop %v2661
      %v2724 = vmul.f32 1.0, %v2723
      %v2725 = vrcp.pop %v2662
      %v2726 = vmul.f32 1.0, %v2725
      %v2727 = vsel %vm2534, 1, 0
      %vm2728 = vcmp.eq.s32.totalorder %v2727, 1
      %v2729 = vsel %vm2728, %v2664, %v2406
      %v2730 = vsel %vm2728, %v2666, %v2409
      %v2731 = vsel %vm2728, %v2668, %v2414
      %v2732 = vsel %vm2728, %v2670, %v2417
      %v2733 = vsel %vm2728, %v2672, %v2422
      %v2734 = vsel %vm2728, %v2674, %v2425
      %v2735 = vsel %vm2728, %v2676, %v2430
      %v2736 = vsel %vm2728, %v2678, %v2433
      %v2737 = vsel %vm2728, %v2680, %v2438
      %v2738 = vsel %vm2728, %v2682, %v2441
      %v2739 = vsel %vm2728, %v2684, %v2446
      %v2740 = vsel %vm2728, %v2686, %v2449
      %v2741 = vsel %vm2728, %v2688, %v2454
      %v2742 = vsel %vm2728, %v2690, %v2457
      %v2743 = vsel %vm2728, %v2692, %v2462
      %v2744 = vsel %vm2728, %v2694, %v2465
      %v2745 = vsel %vm2728, %v2696, %v2470
      %v2746 = vsel %vm2728, %v2698, %v2473
      %v2747 = vsel %vm2728, %v2700, %v2478
      %v2748 = vsel %vm2728, %v2702, %v2481
      %v2749 = vsel %vm2728, %v2704, %v2486
      %v2750 = vsel %vm2728, %v2706, %v2489
      %v2751 = vsel %vm2728, %v2708, %v2494
      %v2752 = vsel %vm2728, %v2710, %v2497
      %v2753 = vsel %vm2728, %v2712, %v2502
      %v2754 = vsel %vm2728, %v2714, %v2505
      %v2755 = vsel %vm2728, %v2716, %v2510
      %v2756 = vsel %vm2728, %v2718, %v2513
      %v2757 = vsel %vm2728, %v2720, %v2518
      %v2758 = vsel %vm2728, %v2722, %v2521
      %v2759 = vsel %vm2728, %v2724, %v2526
      %v2760 = vsel %vm2728, %v2726, %v2529
      %v2761 = vpack.c.bf16 %v2730, %v2729
      %v2762 = vpack.c.bf16 %v2732, %v2731
      %v2763 = vpack.c.bf16 %v2734, %v2733
      %v2764 = vpack.c.bf16 %v2736, %v2735
      %v2765 = vpack.c.bf16 %v2738, %v2737
      %v2766 = vpack.c.bf16 %v2740, %v2739
      %v2767 = vpack.c.bf16 %v2742, %v2741
      %v2768 = vpack.c.bf16 %v2744, %v2743
      %v2769 = vpack.c.bf16 %v2746, %v2745
      %v2770 = vpack.c.bf16 %v2748, %v2747
      %v2771 = vpack.c.bf16 %v2750, %v2749
      %v2772 = vpack.c.bf16 %v2752, %v2751
      %v2773 = vpack.c.bf16 %v2754, %v2753
      %v2774 = vpack.c.bf16 %v2756, %v2755
      %v2775 = vpack.c.bf16 %v2758, %v2757
      %v2776 = vpack.c.bf16 %v2760, %v2759
      %v2793 = vunpack.c.l.b16 %v2761
      %v2794 = vunpack.c.h.b16 %v2761
      %v2795 = vunpack.c.l.b16 %v2762
      %v2796 = vunpack.c.h.b16 %v2762
      %v2797 = vunpack.c.l.b16 %v2763
      %v2798 = vunpack.c.h.b16 %v2763
      %v2799 = vunpack.c.l.b16 %v2764
      %v2800 = vunpack.c.h.b16 %v2764
      %v2801 = vunpack.c.l.b16 %v2765
      %v2802 = vunpack.c.h.b16 %v2765
      %v2803 = vunpack.c.l.b16 %v2766
      %v2804 = vunpack.c.h.b16 %v2766
      %v2805 = vunpack.c.l.b16 %v2767
      %v2806 = vunpack.c.h.b16 %v2767
      %v2807 = vunpack.c.l.b16 %v2768
      %v2808 = vunpack.c.h.b16 %v2768
      %v2809 = vunpack.c.l.b16 %v2769
      %v2810 = vunpack.c.h.b16 %v2769
      %v2811 = vunpack.c.l.b16 %v2770
      %v2812 = vunpack.c.h.b16 %v2770
      %v2813 = vunpack.c.l.b16 %v2771
      %v2814 = vunpack.c.h.b16 %v2771
      %v2815 = vunpack.c.l.b16 %v2772
      %v2816 = vunpack.c.h.b16 %v2772
      %v2817 = vunpack.c.l.b16 %v2773
      %v2818 = vunpack.c.h.b16 %v2773
      %v2819 = vunpack.c.l.b16 %v2774
      %v2820 = vunpack.c.h.b16 %v2774
      %v2821 = vunpack.c.l.b16 %v2775
      %v2822 = vunpack.c.h.b16 %v2775
      %v2823 = vunpack.c.l.b16 %v2776
      %v2824 = vunpack.c.h.b16 %v2776
      %v2825 = vpack.c.b16 %v2793, %v2793
      %v2826 = vpack.c.b16 %v2794, %v2794
      %v2827 = vpack.c.b16 %v2795, %v2795
      %v2828 = vpack.c.b16 %v2796, %v2796
      %v2829 = vpack.c.b16 %v2797, %v2797
      %v2830 = vpack.c.b16 %v2798, %v2798
      %v2831 = vpack.c.b16 %v2799, %v2799
      %v2832 = vpack.c.b16 %v2800, %v2800
      %v2833 = vpack.c.b16 %v2801, %v2801
      %v2834 = vpack.c.b16 %v2802, %v2802
      %v2835 = vpack.c.b16 %v2803, %v2803
      %v2836 = vpack.c.b16 %v2804, %v2804
      %v2837 = vpack.c.b16 %v2805, %v2805
      %v2838 = vpack.c.b16 %v2806, %v2806
      %v2839 = vpack.c.b16 %v2807, %v2807
      %v2840 = vpack.c.b16 %v2808, %v2808
      %v2841 = vpack.c.b16 %v2809, %v2809
      %v2842 = vpack.c.b16 %v2810, %v2810
      %v2843 = vpack.c.b16 %v2811, %v2811
      %v2844 = vpack.c.b16 %v2812, %v2812
      %v2845 = vpack.c.b16 %v2813, %v2813
      %v2846 = vpack.c.b16 %v2814, %v2814
      %v2847 = vpack.c.b16 %v2815, %v2815
      %v2848 = vpack.c.b16 %v2816, %v2816
      %v2849 = vpack.c.b16 %v2817, %v2817
      %v2850 = vpack.c.b16 %v2818, %v2818
      %v2851 = vpack.c.b16 %v2819, %v2819
      %v2852 = vpack.c.b16 %v2820, %v2820
      %v2853 = vpack.c.b16 %v2821, %v2821
      %v2854 = vpack.c.b16 %v2822, %v2822
      %v2855 = vpack.c.b16 %v2823, %v2823
      %v2856 = vpack.c.b16 %v2824, %v2824
      %2889 = vst [vmem:[%s246] sm:$0xf] %v2825
      %2890 = vst [vmem:[%s246 + $0x4] sm:$0xf] %v2826
      %2891 = vst [vmem:[%s246 + $0x8] sm:$0xf] %v2827
      %2892 = vst [vmem:[%s246 + $0xc] sm:$0xf] %v2828
      %2893 = vst [vmem:[%s246 + $0x10] sm:$0xf] %v2829
      %2894 = vst [vmem:[%s246 + $0x14] sm:$0xf] %v2830
      %2895 = vst [vmem:[%s246 + $0x18] sm:$0xf] %v2831
      %2896 = vst [vmem:[%s246 + $0x1c] sm:$0xf] %v2832
      %2897 = vst [vmem:[%s246 + $0x20] sm:$0xf] %v2833
      %2898 = vst [vmem:[%s246 + $0x24] sm:$0xf] %v2834
      %2899 = vst [vmem:[%s246 + $0x28] sm:$0xf] %v2835
      %2900 = vst [vmem:[%s246 + $0x2c] sm:$0xf] %v2836
      %2901 = vst [vmem:[%s246 + $0x30] sm:$0xf] %v2837
      %2902 = vst [vmem:[%s246 + $0x34] sm:$0xf] %v2838
      %2903 = vst [vmem:[%s246 + $0x38] sm:$0xf] %v2839
      %2904 = vst [vmem:[%s246 + $0x3c] sm:$0xf] %v2840
      %2905 = vst [vmem:[%s246 + $0x40] sm:$0xf] %v2841
      %2906 = vst [vmem:[%s246 + $0x44] sm:$0xf] %v2842
      %2907 = vst [vmem:[%s246 + $0x48] sm:$0xf] %v2843
      %2908 = vst [vmem:[%s246 + $0x4c] sm:$0xf] %v2844
      %2909 = vst [vmem:[%s246 + $0x50] sm:$0xf] %v2845
      %2910 = vst [vmem:[%s246 + $0x54] sm:$0xf] %v2846
      %2911 = vst [vmem:[%s246 + $0x58] sm:$0xf] %v2847
      %2912 = vst [vmem:[%s246 + $0x5c] sm:$0xf] %v2848
      %2913 = vst [vmem:[%s246 + $0x60] sm:$0xf] %v2849
      %2914 = vst [vmem:[%s246 + $0x64] sm:$0xf] %v2850
      %2915 = vst [vmem:[%s246 + $0x68] sm:$0xf] %v2851
      %2916 = vst [vmem:[%s246 + $0x6c] sm:$0xf] %v2852
      %2917 = vst [vmem:[%s246 + $0x70] sm:$0xf] %v2853
      %2918 = vst [vmem:[%s246 + $0x74] sm:$0xf] %v2854
      %2919 = vst [vmem:[%s246 + $0x78] sm:$0xf] %v2855
      %2920 = vst [vmem:[%s246 + $0x7c] sm:$0xf] %v2856
      %s2921 = smul.u32 32, %s21
      %p2922 = scmp.lt.s32.totalorder %s20, 1
      %s2923 = scalar_select %p2922, %s20, 1
      %p2924 = scmp.lt.s32.totalorder %s2921, 31
      %s2925 = scalar_select %p2924, %s2921, 31
      %s2926 = smul.addr %s2923, 32
      %s2927 = sadd.s32 %s2925, %s2926
      %s2928 = smul.addr %s2927, 4
      %s2929 = scalar_lea.vmem %s5, %s2928
      // Predicated region
      $region41: #{resnet50_head_forward.1} parent=39 // pred_check
        %p2930 = pneg %p158
      $region42: #{resnet50_head_forward.1} parent=39 // pred_check_branch
        %2932 = sbr.rel (%p2930) target = $region44
      $region43: #{resnet50_head_forward.1} parent=39 // pred_region
        %s2933 = smul.u32 32, %s21
      $region44: #{resnet50_head_forward.1} parent=39 // pred_fallthru
        _
    $region40: #{resnet50_head_forward.1} parent=5 // pred_fallthru
      _
    %p2934 = scmp.le.s32.totalorder 2, %s11
    // Predicated region
    $region45: #{resnet50_head_forward.1} parent=5 // pred_check
      %p2935 = pneg %p2934
    $region46: #{resnet50_head_forward.1} parent=5 // pred_check_branch
      %2937 = sbr.rel (%p2935) target = $region48
    $region47: #{resnet50_head_forward.1} parent=5 // pred_region
      %s2938 = ssub.s32 %s11, 2
      // Predicated region
      $region49: #{resnet50_head_forward.1} parent=47 // pred_check
        %p2939 = pneg %p164
      $region50: #{resnet50_head_forward.1} parent=47 // pred_check_branch
        %2941 = sbr.rel (%p2939) target = $region52
      $region51: #{resnet50_head_forward.1} parent=47 // pred_region
        %s2942 = smul.u32 32, %s23
        %p2943 = scmp.lt.s32.totalorder %s22, 1
        %s2944 = scalar_select %p2943, %s22, 1
        %p2945 = scmp.lt.s32.totalorder %s2942, 31
        %s2946 = scalar_select %p2945, %s2942, 31
        %s2947 = smul.addr %s2944, 32
        %s2948 = sadd.s32 %s2946, %s2947
        %s2949 = smul.addr %s2948, 4
        %s2950 = scalar_lea.vmem %s5, %s2949
      $region52: #{resnet50_head_forward.1} parent=47 // pred_fallthru
        _
    $region48: #{resnet50_head_forward.1} parent=5 // pred_fallthru
      _
  $region6: #{resnet50_head_forward.1} parent=0 // loop_footer
    %s15 = sadd.s32 1, %s11
  $region7: #{resnet50_head_forward.1} parent=0 // loop_footer_branch
    %10 = sbr.rel target = $region3
  $region8: #{resnet50_head_forward.1} parent=0 // loop_exit
    _

</llo_original>
